<compile_context>
chip_gen: v7x
topology: tpu7x:2x2x1
jax: 0.10.0
libtpu: 0.0.40
codegen_flags: <defaults>
</compile_context>

<pallas_src>
import numpy as np
import jax
import jax.numpy as jnp
from jax.experimental import pallas as pl
from jax.experimental.pallas import tpu as pltpu


# ---------------------------------------------------------------------------
# PIL-style bicubic resize matrices (deterministic "parameters", host side)
# ---------------------------------------------------------------------------
def _cubic(x, a=-0.5):
    x = abs(float(x))
    if x < 1.0:
        return (a + 2.0) * x ** 3 - (a + 3.0) * x ** 2 + 1.0
    if x < 2.0:
        return a * x ** 3 - 5.0 * a * x ** 2 + 8.0 * a * x - 4.0 * a
    return 0.0


def _resize_matrix(in_size, out_size):
    """(out_size, in_size) matrix reproducing PIL Image.BICUBIC resampling."""
    scale = in_size / out_size
    filterscale = max(scale, 1.0)
    support = 2.0 * filterscale  # bicubic support == 2
    M = np.zeros((out_size, in_size), dtype=np.float64)
    for i in range(out_size):
        center = (i + 0.5) * scale
        xmin = max(int(center - support + 0.5), 0)
        xmax = min(int(center + support + 0.5), in_size)
        ws = np.array([_cubic((x - center + 0.5) / filterscale)
                       for x in range(xmin, xmax)], dtype=np.float64)
        s = ws.sum()
        if s != 0.0:
            ws = ws / s
        M[i, xmin:xmax] = ws
    return M.astype(np.float32)


def _pad_to(n, m):
    return ((n + m - 1) // m) * m


def _cdiv(a, b):
    return -(-a // b)


# ---------------------------------------------------------------------------
# Pallas kernel: factorized bicubic down+up over a batch of P planes.
#   lr_p = Uh @ (Dh @ (x_p @ DwT)) @ UwT
# Column ops run per plane (M = Hp keeps MXU rows full); the row ops are
# merged over all P planes via a lane-merged (Hp, P*Wdp) intermediate so the
# MXU sees two wide matmuls instead of 2P narrow (M = Hdp) ones.
# ---------------------------------------------------------------------------
def _bicubic_kernel(dh_ref, uh_ref, dwt_ref, uwt_ref, x_ref, o_ref, mid_ref):
    P = x_ref.shape[0]
    wdp = dwt_ref.shape[1]

    # 1) column downsample per plane: (Hp, Wp) @ (Wp, Wdp) written to a
    #    128-aligned lane slice of the lane-merged intermediate.
    for p in range(P):  # static unroll; P is small
        mid_ref[:, p * wdp:(p + 1) * wdp] = jnp.dot(
            x_ref[p], dwt_ref[...],
            preferred_element_type=jnp.float32).astype(mid_ref.dtype)

    # 2) row downsample + row upsample as two wide MXU passes (N = P*Wdp).
    #    (bf16 operands, f32 accumulation; a few uint8 LSBs of error on
    #    0-255 data is acceptable for this data-prep pipeline.)
    r = jnp.dot(dh_ref[...], mid_ref[...],
                preferred_element_type=jnp.float32).astype(jnp.bfloat16)
    mid_ref[...] = jnp.dot(uh_ref[...], r,
                           preferred_element_type=jnp.float32
                           ).astype(mid_ref.dtype)

    # 3) column upsample per plane straight into the output block (no f32
    #    staging buffer), with the [0,255] clip fused into the epilogue.
    for p in range(P):
        up = jnp.dot(mid_ref[:, p * wdp:(p + 1) * wdp], uwt_ref[...],
                     preferred_element_type=jnp.float32)
        o_ref[p] = jnp.clip(up, 0.0, 255.0).astype(o_ref.dtype)


# ---------------------------------------------------------------------------
# VMEM sizing helpers
# ---------------------------------------------------------------------------
def _vmem_capacity_bytes():
    try:
        info = pltpu.get_tpu_info()
        cap = int(getattr(info, "vmem_capacity_bytes", 0) or 0)
        if cap > 0:
            return cap
    except Exception:
        pass
    return 64 << 20  # conservative fallback: v7x per-TensorCore VMEM


def _plane_batch(nc, hp, wp, hdp, wdp, budget_bytes):
    """Planes per grid step sized against the real VMEM budget (includes the
    lane-merged mid scratch and the resident operator pipeline buffers)."""
    # 4 resident bf16 operators; constant index maps still get a 2nd buffer.
    mat_bytes = 2 * 2 * (hdp * hp + wp * wdp) * 2
    per_plane = (2 * hp * wp * 2      # bf16 input block, double-buffered
                 + 2 * hp * wp * 2    # bf16 output block, double-buffered
                 + hp * wdp * 2)      # bf16 lane-merged mid scratch
    avail = budget_bytes - mat_bytes - (4 << 20)   # slack for Mosaic internals
    return int(max(1, min(nc, avail // per_plane)))


# ---------------------------------------------------------------------------
# LR generation: bicubic downsample by `scale` then upsample back (bf16 out)
# ---------------------------------------------------------------------------
def bicubic_down_up(x_nchw, scale):
    N, C, H, W = x_nchw.shape
    Hd, Wd = H // scale, W // scale

    # bf16 blocks: sublane dims padded to x16, lane dims to x128.
    Hp, Wp = _pad_to(H, 16), _pad_to(W, 128)
    Hdp, Wdp = _pad_to(Hd, 16), _pad_to(Wd, 128)

    # Factorized PIL-bicubic operators, zero-padded; column operators are
    # pre-transposed on the host so the kernel never transposes anything.
    dh = np.zeros((Hdp, Hp), np.float32)
    dh[:Hd, :H] = _resize_matrix(H, Hd)            # down rows  (Hd, H)
    uh = np.zeros((Hp, Hdp), np.float32)
    uh[:H, :Hd] = _resize_matrix(Hd, H)            # up rows    (H, Hd)
    dwt = np.zeros((Wp, Wdp), np.float32)
    dwt[:W, :Wd] = _resize_matrix(W, Wd).T         # down cols^T (W, Wd)
    uwt = np.zeros((Wdp, Wp), np.float32)
    uwt[:Wd, :W] = _resize_matrix(Wd, W).T         # up cols^T   (Wd, W)

    nc = N * C
    cap = _vmem_capacity_bytes()
    budget = (cap * 7) // 10                       # P sized against ~70% VMEM
    P = _plane_batch(nc, Hp, Wp, Hdp, Wdp, budget)
    # TODO(synk): on v7x (2 TensorCores) an even grid-step count balances the
    # cores; without reliable chip detection we keep the single-TC-optimal P.
    ncp = _pad_to(nc, P)

    # Cast to bf16 BEFORE padding: halves the bytes moved by the pad pass.
    planes = x_nchw.reshape(nc, H, W).astype(jnp.bfloat16)
    planes = jnp.pad(planes, ((0, ncp - nc), (0, Hp - H), (0, Wp - W)))

    # VMEM limit from the actual block math (+ slack), capped below physical
    # so Mosaic keeps internal headroom on all generations.
    io_bytes = 2 * P * Hp * Wp * 2 + 2 * P * Hp * Wp * 2   # dbl-buffered in+out
    mat_bytes = 2 * 2 * (Hdp * Hp + Wp * Wdp) * 2
    mid_bytes = Hp * P * Wdp * 2
    need = io_bytes + mat_bytes + mid_bytes
    vmem_limit = int(min(max(need + (8 << 20), 32 << 20), (cap * 85) // 100))

    mats = [jnp.asarray(m, dtype=jnp.bfloat16) for m in (dh, uh, dwt, uwt)]

    out = pl.pallas_call(
        _bicubic_kernel,
        out_shape=jax.ShapeDtypeStruct((ncp, Hp, Wp), jnp.bfloat16),
        grid_spec=pltpu.PrefetchScalarGridSpec(
            num_scalar_prefetch=0,
            grid=(ncp // P,),
            in_specs=[
                pl.BlockSpec((Hdp, Hp), lambda g: (0, 0)),       # Dh   (resident)
                pl.BlockSpec((Hp, Hdp), lambda g: (0, 0)),       # Uh   (resident)
                pl.BlockSpec((Wp, Wdp), lambda g: (0, 0)),       # Dw^T (resident)
                pl.BlockSpec((Wdp, Wp), lambda g: (0, 0)),       # Uw^T (resident)
                pl.BlockSpec((P, Hp, Wp), lambda g: (g, 0, 0)),  # P planes / step
            ],
            out_specs=pl.BlockSpec((P, Hp, Wp), lambda g: (g, 0, 0)),
            scratch_shapes=[pltpu.VMEM((Hp, P * Wdp), jnp.bfloat16)],
        ),
        compiler_params=pltpu.CompilerParams(
            dimension_semantics=("parallel",),
            vmem_limit_bytes=vmem_limit),
    )(*mats, planes)

    return out[:nc, :H, :W].reshape(N, C, H, W)


# ---------------------------------------------------------------------------
# Glue: cropping + patch extraction matching make_train / make_test semantics
# ---------------------------------------------------------------------------
def _extract_patches(img_nchw, patch):
    """Non-overlapping patches, stride == patch.  Mirrors the crop loop order
    (outer index over width, inner over height) and returns HWC patches."""
    N, C, H, W = img_nchw.shape
    nh, nw = H // patch, W // patch
    x = img_nchw[:, :, :nh * patch, :nw * patch]
    x = x.reshape(N, C, nh, patch, nw, patch)
    x = x.transpose(0, 4, 2, 3, 5, 1)          # (N, nw, nh, ph, pw, C)
    return x.reshape(N * nw * nh, patch, patch, C)


def make_hdf5_forward(hr_nchw, scale=4, patch_size=8):
    """Replicates Make_Hdf5.forward's tensor math.

    Returns (train_lr_patches, train_hr_patches, test_lr, test_hr).
    LR tensors are bfloat16 (<= 0.5 intensity-LSB off f32 on 0-255 data);
    HR tensors stay float32.
    # TODO(synk): file listing, PIL decode and h5py dataset writes are host-side
    # I/O with no Pallas equivalent and are not reproduced here.
    # TODO(synk): PIL materializes the intermediate downsampled image (and the
    # final LR) as rounded uint8; that quantization is not reproduced — only a
    # final clip to [0, 255] (fused into the kernel) is applied.
    """
    N, C, H, W = hr_nchw.shape
    # read_data(): crop to multiples of `scale`
    Hc, Wc = H - H % scale, W - W % scale
    hr = hr_nchw[:, :, :Hc, :Wc].astype(jnp.float32)
    # read_data(): lr = up(down(hr)) -- Pallas hot path; clip fused in-kernel
    lr = bicubic_down_up(hr, scale)

    # make_train(): patch extraction (augment() is never called in forward)
    train_hr = _extract_patches(hr, patch_size)
    train_lr = _extract_patches(lr, patch_size)
    # make_test(): whole images, HWC like np.array(PIL.Image)
    test_hr = hr.transpose(0, 2, 3, 1)
    test_lr = lr.transpose(0, 2, 3, 1)
    return train_lr, train_hr, test_lr, test_hr


# ---------------------------------------------------------------------------
# Host-side f32 reference of the LR path (for a loose numerical check)
# ---------------------------------------------------------------------------
def _reference_lr(hr_nchw, scale):
    x = np.asarray(hr_nchw, np.float32)
    N, C, H, W = x.shape
    Hd, Wd = H // scale, W // scale
    mh = _resize_matrix(Hd, H) @ _resize_matrix(H, Hd)   # Uh @ Dh  (H, H)
    mw = _resize_matrix(Wd, W) @ _resize_matrix(W, Wd)   # Uw @ Dw  (W, W)
    lr = np.einsum('hk,nckw->nchw', mh, x)
    lr = np.einsum('nchw,vw->nchv', lr, mw)
    return np.clip(lr, 0.0, 255.0)


if __name__ == "__main__":
    key = jax.random.PRNGKey(0)
    # small deterministic "image" batch: N=2, C=3 (RGB), 16x16, values in [0,255]
    hr = jax.random.uniform(key, (2, 3, 16, 16), jnp.float32, 0.0, 255.0)

    train_lr, train_hr, test_lr, test_hr = make_hdf5_forward(
        hr, scale=4, patch_size=8)
    jax.block_until_ready((train_lr, train_hr, test_lr, test_hr))

    assert train_lr.shape == (8, 8, 8, 3) and train_hr.shape == (8, 8, 8, 3)
    assert test_lr.shape == (2, 16, 16, 3) and test_hr.shape == (2, 16, 16, 3)
    # sanity: HR patches are exact crops of the input
    np.testing.assert_allclose(
        np.asarray(train_hr[0]),
        np.asarray(hr[0].transpose(1, 2, 0)[:8, :8, :]), rtol=0, atol=0)
    # sanity: LR matches the f32 reference (bf16 in-kernel compute/output =>
    # a few uint8-LSBs of deviation on 0-255 data is expected and acceptable)
    lr_ref = np.transpose(_reference_lr(np.asarray(hr), 4), (0, 2, 3, 1))
    test_lr_f32 = np.asarray(test_lr.astype(jnp.float32))
    np.testing.assert_allclose(test_lr_f32, lr_ref, rtol=0, atol=16.0)
    assert np.isfinite(test_lr_f32).all()
    print("KERNEL_OK")
</pallas_src>

<mosaic_0001>
module attributes {stable_mosaic.version = 11 : i64} {
  func.func @_bicubic_kernel(%arg0: i32, %arg1: memref<16x16xbf16, #tpu.memory_space<vmem>>, %arg2: memref<16x16xbf16, #tpu.memory_space<vmem>>, %arg3: memref<128x128xbf16, #tpu.memory_space<vmem>>, %arg4: memref<128x128xbf16, #tpu.memory_space<vmem>>, %arg5: memref<6x16x128xbf16, #tpu.memory_space<vmem>>, %arg6: memref<6x16x128xbf16, #tpu.memory_space<vmem>>, %arg7: memref<16x768xbf16, #tpu.memory_space<vmem>>) attributes {dimension_semantics = [#tpu.dimension_semantics<parallel>], iteration_bounds = array<i64: 1>, scalar_prefetch = 0 : i64, scratch_operands = 1 : i64, tpu.core_type = #tpu.core_type<tc>, window_params = [{pipeline_mode = #tpu.pipeline_mode<synchronous>, transform_indices = @transform_0, window_bounds = array<i64: 16, 16>}, {pipeline_mode = #tpu.pipeline_mode<synchronous>, transform_indices = @transform_1, window_bounds = array<i64: 16, 16>}, {pipeline_mode = #tpu.pipeline_mode<synchronous>, transform_indices = @transform_2, window_bounds = array<i64: 128, 128>}, {pipeline_mode = #tpu.pipeline_mode<synchronous>, transform_indices = @transform_3, window_bounds = array<i64: 128, 128>}, {transform_indices = @transform_4, window_bounds = array<i64: 6, 16, 128>}, {transform_indices = @transform_5, window_bounds = array<i64: 6, 16, 128>}]} {
    %c0 = arith.constant 0 : index
    %c0_0 = arith.constant 0 : index
    %c0_1 = arith.constant 0 : index
    %0 = vector.load %arg5[%c0, %c0_0, %c0_1] : memref<6x16x128xbf16, #tpu.memory_space<vmem>>, vector<1x16x128xbf16>
    %1 = vector.shape_cast %0 : vector<1x16x128xbf16> to vector<16x128xbf16>
    %c0_2 = arith.constant 0 : index
    %c0_3 = arith.constant 0 : index
    %2 = vector.load %arg3[%c0_2, %c0_3] : memref<128x128xbf16, #tpu.memory_space<vmem>>, vector<128x128xbf16>
    %cst = arith.constant dense<0.000000e+00> : vector<16x128xf32>
    %3 = tpu.matmul %1, %2, %cst {dimension_numbers = #tpu.dot_dimension_numbers<[1], [0], [0], [1], [0, 0, 1, 1], [], []>} : vector<16x128xbf16>, vector<128x128xbf16>, vector<16x128xf32> -> vector<16x128xf32>
    %4 = arith.truncf %3 : vector<16x128xf32> to vector<16x128xbf16>
    %c0_4 = arith.constant 0 : index
    %c0_5 = arith.constant 0 : index
    %5 = vector.load %arg7[%c0_4, %c0_5] : memref<16x768xbf16, #tpu.memory_space<vmem>>, vector<16x128xbf16>
    tpu.vector_store %arg7[%c0_4, %c0_5], %4 {strides = array<i32>} : memref<16x768xbf16, #tpu.memory_space<vmem>>, vector<16x128xbf16>,
    %c1 = arith.constant 1 : index
    %c0_6 = arith.constant 0 : index
    %c0_7 = arith.constant 0 : index
    %6 = vector.load %arg5[%c1, %c0_6, %c0_7] : memref<6x16x128xbf16, #tpu.memory_space<vmem>>, vector<1x16x128xbf16>
    %7 = vector.shape_cast %6 : vector<1x16x128xbf16> to vector<16x128xbf16>
    %c0_8 = arith.constant 0 : index
    %c0_9 = arith.constant 0 : index
    %8 = vector.load %arg3[%c0_8, %c0_9] : memref<128x128xbf16, #tpu.memory_space<vmem>>, vector<128x128xbf16>
    %cst_10 = arith.constant dense<0.000000e+00> : vector<16x128xf32>
    %9 = tpu.matmul %7, %8, %cst_10 {dimension_numbers = #tpu.dot_dimension_numbers<[1], [0], [0], [1], [0, 0, 1, 1], [], []>} : vector<16x128xbf16>, vector<128x128xbf16>, vector<16x128xf32> -> vector<16x128xf32>
    %10 = arith.truncf %9 : vector<16x128xf32> to vector<16x128xbf16>
    %c0_11 = arith.constant 0 : index
    %c128 = arith.constant 128 : index
    %11 = vector.load %arg7[%c0_11, %c128] : memref<16x768xbf16, #tpu.memory_space<vmem>>, vector<16x128xbf16>
    tpu.vector_store %arg7[%c0_11, %c128], %10 {strides = array<i32>} : memref<16x768xbf16, #tpu.memory_space<vmem>>, vector<16x128xbf16>,
    %c2 = arith.constant 2 : index
    %c0_12 = arith.constant 0 : index
    %c0_13 = arith.constant 0 : index
    %12 = vector.load %arg5[%c2, %c0_12, %c0_13] : memref<6x16x128xbf16, #tpu.memory_space<vmem>>, vector<1x16x128xbf16>
    %13 = vector.shape_cast %12 : vector<1x16x128xbf16> to vector<16x128xbf16>
    %c0_14 = arith.constant 0 : index
    %c0_15 = arith.constant 0 : index
    %14 = vector.load %arg3[%c0_14, %c0_15] : memref<128x128xbf16, #tpu.memory_space<vmem>>, vector<128x128xbf16>
    %cst_16 = arith.constant dense<0.000000e+00> : vector<16x128xf32>
    %15 = tpu.matmul %13, %14, %cst_16 {dimension_numbers = #tpu.dot_dimension_numbers<[1], [0], [0], [1], [0, 0, 1, 1], [], []>} : vector<16x128xbf16>, vector<128x128xbf16>, vector<16x128xf32> -> vector<16x128xf32>
    %16 = arith.truncf %15 : vector<16x128xf32> to vector<16x128xbf16>
    %c0_17 = arith.constant 0 : index
    %c256 = arith.constant 256 : index
    %17 = vector.load %arg7[%c0_17, %c256] : memref<16x768xbf16, #tpu.memory_space<vmem>>, vector<16x128xbf16>
    tpu.vector_store %arg7[%c0_17, %c256], %16 {strides = array<i32>} : memref<16x768xbf16, #tpu.memory_space<vmem>>, vector<16x128xbf16>,
    %c3 = arith.constant 3 : index
    %c0_18 = arith.constant 0 : index
    %c0_19 = arith.constant 0 : index
    %18 = vector.load %arg5[%c3, %c0_18, %c0_19] : memref<6x16x128xbf16, #tpu.memory_space<vmem>>, vector<1x16x128xbf16>
    %19 = vector.shape_cast %18 : vector<1x16x128xbf16> to vector<16x128xbf16>
    %c0_20 = arith.constant 0 : index
    %c0_21 = arith.constant 0 : index
    %20 = vector.load %arg3[%c0_20, %c0_21] : memref<128x128xbf16, #tpu.memory_space<vmem>>, vector<128x128xbf16>
    %cst_22 = arith.constant dense<0.000000e+00> : vector<16x128xf32>
    %21 = tpu.matmul %19, %20, %cst_22 {dimension_numbers = #tpu.dot_dimension_numbers<[1], [0], [0], [1], [0, 0, 1, 1], [], []>} : vector<16x128xbf16>, vector<128x128xbf16>, vector<16x128xf32> -> vector<16x128xf32>
    %22 = arith.truncf %21 : vector<16x128xf32> to vector<16x128xbf16>
    %c0_23 = arith.constant 0 : index
    %c384 = arith.constant 384 : index
    %23 = vector.load %arg7[%c0_23, %c384] : memref<16x768xbf16, #tpu.memory_space<vmem>>, vector<16x128xbf16>
    tpu.vector_store %arg7[%c0_23, %c384], %22 {strides = array<i32>} : memref<16x768xbf16, #tpu.memory_space<vmem>>, vector<16x128xbf16>,
    %c4 = arith.constant 4 : index
    %c0_24 = arith.constant 0 : index
    %c0_25 = arith.constant 0 : index
    %24 = vector.load %arg5[%c4, %c0_24, %c0_25] : memref<6x16x128xbf16, #tpu.memory_space<vmem>>, vector<1x16x128xbf16>
    %25 = vector.shape_cast %24 : vector<1x16x128xbf16> to vector<16x128xbf16>
    %c0_26 = arith.constant 0 : index
    %c0_27 = arith.constant 0 : index
    %26 = vector.load %arg3[%c0_26, %c0_27] : memref<128x128xbf16, #tpu.memory_space<vmem>>, vector<128x128xbf16>
    %cst_28 = arith.constant dense<0.000000e+00> : vector<16x128xf32>
    %27 = tpu.matmul %25, %26, %cst_28 {dimension_numbers = #tpu.dot_dimension_numbers<[1], [0], [0], [1], [0, 0, 1, 1], [], []>} : vector<16x128xbf16>, vector<128x128xbf16>, vector<16x128xf32> -> vector<16x128xf32>
    %28 = arith.truncf %27 : vector<16x128xf32> to vector<16x128xbf16>
    %c0_29 = arith.constant 0 : index
    %c512 = arith.constant 512 : index
    %29 = vector.load %arg7[%c0_29, %c512] : memref<16x768xbf16, #tpu.memory_space<vmem>>, vector<16x128xbf16>
    tpu.vector_store %arg7[%c0_29, %c512], %28 {strides = array<i32>} : memref<16x768xbf16, #tpu.memory_space<vmem>>, vector<16x128xbf16>,
    %c5 = arith.constant 5 : index
    %c0_30 = arith.constant 0 : index
    %c0_31 = arith.constant 0 : index
    %30 = vector.load %arg5[%c5, %c0_30, %c0_31] : memref<6x16x128xbf16, #tpu.memory_space<vmem>>, vector<1x16x128xbf16>
    %31 = vector.shape_cast %30 : vector<1x16x128xbf16> to vector<16x128xbf16>
    %c0_32 = arith.constant 0 : index
    %c0_33 = arith.constant 0 : index
    %32 = vector.load %arg3[%c0_32, %c0_33] : memref<128x128xbf16, #tpu.memory_space<vmem>>, vector<128x128xbf16>
    %cst_34 = arith.constant dense<0.000000e+00> : vector<16x128xf32>
    %33 = tpu.matmul %31, %32, %cst_34 {dimension_numbers = #tpu.dot_dimension_numbers<[1], [0], [0], [1], [0, 0, 1, 1], [], []>} : vector<16x128xbf16>, vector<128x128xbf16>, vector<16x128xf32> -> vector<16x128xf32>
    %34 = arith.truncf %33 : vector<16x128xf32> to vector<16x128xbf16>
    %c0_35 = arith.constant 0 : index
    %c640 = arith.constant 640 : index
    %35 = vector.load %arg7[%c0_35, %c640] : memref<16x768xbf16, #tpu.memory_space<vmem>>, vector<16x128xbf16>
    tpu.vector_store %arg7[%c0_35, %c640], %34 {strides = array<i32>} : memref<16x768xbf16, #tpu.memory_space<vmem>>, vector<16x128xbf16>,
    %c0_36 = arith.constant 0 : index
    %c0_37 = arith.constant 0 : index
    %36 = vector.load %arg1[%c0_36, %c0_37] : memref<16x16xbf16, #tpu.memory_space<vmem>>, vector<16x16xbf16>
    %c0_38 = arith.constant 0 : index
    %c0_39 = arith.constant 0 : index
    %37 = vector.load %arg7[%c0_38, %c0_39] : memref<16x768xbf16, #tpu.memory_space<vmem>>, vector<16x768xbf16>
    %cst_40 = arith.constant dense<0.000000e+00> : vector<16x768xf32>
    %38 = tpu.matmul %36, %37, %cst_40 {dimension_numbers = #tpu.dot_dimension_numbers<[1], [0], [0], [1], [0, 0, 1, 1], [], []>} : vector<16x16xbf16>, vector<16x768xbf16>, vector<16x768xf32> -> vector<16x768xf32>
    %39 = arith.truncf %38 : vector<16x768xf32> to vector<16x768xbf16>
    %c0_41 = arith.constant 0 : index
    %c0_42 = arith.constant 0 : index
    %40 = vector.load %arg2[%c0_41, %c0_42] : memref<16x16xbf16, #tpu.memory_space<vmem>>, vector<16x16xbf16>
    %cst_43 = arith.constant dense<0.000000e+00> : vector<16x768xf32>
    %41 = tpu.matmul %40, %39, %cst_43 {dimension_numbers = #tpu.dot_dimension_numbers<[1], [0], [0], [1], [0, 0, 1, 1], [], []>} : vector<16x16xbf16>, vector<16x768xbf16>, vector<16x768xf32> -> vector<16x768xf32>
    %42 = arith.truncf %41 : vector<16x768xf32> to vector<16x768xbf16>
    %c0_44 = arith.constant 0 : index
    %c0_45 = arith.constant 0 : index
    %43 = vector.load %arg7[%c0_44, %c0_45] : memref<16x768xbf16, #tpu.memory_space<vmem>>, vector<16x768xbf16>
    tpu.vector_store %arg7[%c0_44, %c0_45], %42 {strides = array<i32>} : memref<16x768xbf16, #tpu.memory_space<vmem>>, vector<16x768xbf16>,
    %c0_46 = arith.constant 0 : index
    %c0_47 = arith.constant 0 : index
    %44 = vector.load %arg7[%c0_46, %c0_47] : memref<16x768xbf16, #tpu.memory_space<vmem>>, vector<16x128xbf16>
    %c0_48 = arith.constant 0 : index
    %c0_49 = arith.constant 0 : index
    %45 = vector.load %arg4[%c0_48, %c0_49] : memref<128x128xbf16, #tpu.memory_space<vmem>>, vector<128x128xbf16>
    %cst_50 = arith.constant dense<0.000000e+00> : vector<16x128xf32>
    %46 = tpu.matmul %44, %45, %cst_50 {dimension_numbers = #tpu.dot_dimension_numbers<[1], [0], [0], [1], [0, 0, 1, 1], [], []>} : vector<16x128xbf16>, vector<128x128xbf16>, vector<16x128xf32> -> vector<16x128xf32>
    %cst_51 = arith.constant 0.000000e+00 : f32
    %cst_52 = arith.constant 2.550000e+02 : f32
    %47 = vector.broadcast %cst_51 : f32 to vector<16x128xf32>
    %48 = arith.maximumf %47, %46 : vector<16x128xf32>
    %49 = vector.broadcast %cst_52 : f32 to vector<16x128xf32>
    %50 = arith.minimumf %49, %48 : vector<16x128xf32>
    %51 = arith.truncf %50 : vector<16x128xf32> to vector<16x128xbf16>
    %c0_53 = arith.constant 0 : index
    %c0_54 = arith.constant 0 : index
    %c0_55 = arith.constant 0 : index
    %52 = vector.load %arg6[%c0_53, %c0_54, %c0_55] : memref<6x16x128xbf16, #tpu.memory_space<vmem>>, vector<1x16x128xbf16>
    %53 = vector.shape_cast %52 : vector<1x16x128xbf16> to vector<16x128xbf16>
    %54 = vector.shape_cast %51 : vector<16x128xbf16> to vector<1x16x128xbf16>
    tpu.vector_store %arg6[%c0_53, %c0_54, %c0_55], %54 {strides = array<i32>} : memref<6x16x128xbf16, #tpu.memory_space<vmem>>, vector<1x16x128xbf16>,
    %c0_56 = arith.constant 0 : index
    %c128_57 = arith.constant 128 : index
    %55 = vector.load %arg7[%c0_56, %c128_57] : memref<16x768xbf16, #tpu.memory_space<vmem>>, vector<16x128xbf16>
    %c0_58 = arith.constant 0 : index
    %c0_59 = arith.constant 0 : index
    %56 = vector.load %arg4[%c0_58, %c0_59] : memref<128x128xbf16, #tpu.memory_space<vmem>>, vector<128x128xbf16>
    %cst_60 = arith.constant dense<0.000000e+00> : vector<16x128xf32>
    %57 = tpu.matmul %55, %56, %cst_60 {dimension_numbers = #tpu.dot_dimension_numbers<[1], [0], [0], [1], [0, 0, 1, 1], [], []>} : vector<16x128xbf16>, vector<128x128xbf16>, vector<16x128xf32> -> vector<16x128xf32>
    %cst_61 = arith.constant 0.000000e+00 : f32
    %cst_62 = arith.constant 2.550000e+02 : f32
    %58 = vector.broadcast %cst_61 : f32 to vector<16x128xf32>
    %59 = arith.maximumf %58, %57 : vector<16x128xf32>
    %60 = vector.broadcast %cst_62 : f32 to vector<16x128xf32>
    %61 = arith.minimumf %60, %59 : vector<16x128xf32>
    %62 = arith.truncf %61 : vector<16x128xf32> to vector<16x128xbf16>
    %c1_63 = arith.constant 1 : index
    %c0_64 = arith.constant 0 : index
    %c0_65 = arith.constant 0 : index
    %63 = vector.load %arg6[%c1_63, %c0_64, %c0_65] : memref<6x16x128xbf16, #tpu.memory_space<vmem>>, vector<1x16x128xbf16>
    %64 = vector.shape_cast %63 : vector<1x16x128xbf16> to vector<16x128xbf16>
    %65 = vector.shape_cast %62 : vector<16x128xbf16> to vector<1x16x128xbf16>
    tpu.vector_store %arg6[%c1_63, %c0_64, %c0_65], %65 {strides = array<i32>} : memref<6x16x128xbf16, #tpu.memory_space<vmem>>, vector<1x16x128xbf16>,
    %c0_66 = arith.constant 0 : index
    %c256_67 = arith.constant 256 : index
    %66 = vector.load %arg7[%c0_66, %c256_67] : memref<16x768xbf16, #tpu.memory_space<vmem>>, vector<16x128xbf16>
    %c0_68 = arith.constant 0 : index
    %c0_69 = arith.constant 0 : index
    %67 = vector.load %arg4[%c0_68, %c0_69] : memref<128x128xbf16, #tpu.memory_space<vmem>>, vector<128x128xbf16>
    %cst_70 = arith.constant dense<0.000000e+00> : vector<16x128xf32>
    %68 = tpu.matmul %66, %67, %cst_70 {dimension_numbers = #tpu.dot_dimension_numbers<[1], [0], [0], [1], [0, 0, 1, 1], [], []>} : vector<16x128xbf16>, vector<128x128xbf16>, vector<16x128xf32> -> vector<16x128xf32>
    %cst_71 = arith.constant 0.000000e+00 : f32
    %cst_72 = arith.constant 2.550000e+02 : f32
    %69 = vector.broadcast %cst_71 : f32 to vector<16x128xf32>
    %70 = arith.maximumf %69, %68 : vector<16x128xf32>
    %71 = vector.broadcast %cst_72 : f32 to vector<16x128xf32>
    %72 = arith.minimumf %71, %70 : vector<16x128xf32>
    %73 = arith.truncf %72 : vector<16x128xf32> to vector<16x128xbf16>
    %c2_73 = arith.constant 2 : index
    %c0_74 = arith.constant 0 : index
    %c0_75 = arith.constant 0 : index
    %74 = vector.load %arg6[%c2_73, %c0_74, %c0_75] : memref<6x16x128xbf16, #tpu.memory_space<vmem>>, vector<1x16x128xbf16>
    %75 = vector.shape_cast %74 : vector<1x16x128xbf16> to vector<16x128xbf16>
    %76 = vector.shape_cast %73 : vector<16x128xbf16> to vector<1x16x128xbf16>
    tpu.vector_store %arg6[%c2_73, %c0_74, %c0_75], %76 {strides = array<i32>} : memref<6x16x128xbf16, #tpu.memory_space<vmem>>, vector<1x16x128xbf16>,
    %c0_76 = arith.constant 0 : index
    %c384_77 = arith.constant 384 : index
    %77 = vector.load %arg7[%c0_76, %c384_77] : memref<16x768xbf16, #tpu.memory_space<vmem>>, vector<16x128xbf16>
    %c0_78 = arith.constant 0 : index
    %c0_79 = arith.constant 0 : index
    %78 = vector.load %arg4[%c0_78, %c0_79] : memref<128x128xbf16, #tpu.memory_space<vmem>>, vector<128x128xbf16>
    %cst_80 = arith.constant dense<0.000000e+00> : vector<16x128xf32>
    %79 = tpu.matmul %77, %78, %cst_80 {dimension_numbers = #tpu.dot_dimension_numbers<[1], [0], [0], [1], [0, 0, 1, 1], [], []>} : vector<16x128xbf16>, vector<128x128xbf16>, vector<16x128xf32> -> vector<16x128xf32>
    %cst_81 = arith.constant 0.000000e+00 : f32
    %cst_82 = arith.constant 2.550000e+02 : f32
    %80 = vector.broadcast %cst_81 : f32 to vector<16x128xf32>
    %81 = arith.maximumf %80, %79 : vector<16x128xf32>
    %82 = vector.broadcast %cst_82 : f32 to vector<16x128xf32>
    %83 = arith.minimumf %82, %81 : vector<16x128xf32>
    %84 = arith.truncf %83 : vector<16x128xf32> to vector<16x128xbf16>
    %c3_83 = arith.constant 3 : index
    %c0_84 = arith.constant 0 : index
    %c0_85 = arith.constant 0 : index
    %85 = vector.load %arg6[%c3_83, %c0_84, %c0_85] : memref<6x16x128xbf16, #tpu.memory_space<vmem>>, vector<1x16x128xbf16>
    %86 = vector.shape_cast %85 : vector<1x16x128xbf16> to vector<16x128xbf16>
    %87 = vector.shape_cast %84 : vector<16x128xbf16> to vector<1x16x128xbf16>
    tpu.vector_store %arg6[%c3_83, %c0_84, %c0_85], %87 {strides = array<i32>} : memref<6x16x128xbf16, #tpu.memory_space<vmem>>, vector<1x16x128xbf16>,
    %c0_86 = arith.constant 0 : index
    %c512_87 = arith.constant 512 : index
    %88 = vector.load %arg7[%c0_86, %c512_87] : memref<16x768xbf16, #tpu.memory_space<vmem>>, vector<16x128xbf16>
    %c0_88 = arith.constant 0 : index
    %c0_89 = arith.constant 0 : index
    %89 = vector.load %arg4[%c0_88, %c0_89] : memref<128x128xbf16, #tpu.memory_space<vmem>>, vector<128x128xbf16>
    %cst_90 = arith.constant dense<0.000000e+00> : vector<16x128xf32>
    %90 = tpu.matmul %88, %89, %cst_90 {dimension_numbers = #tpu.dot_dimension_numbers<[1], [0], [0], [1], [0, 0, 1, 1], [], []>} : vector<16x128xbf16>, vector<128x128xbf16>, vector<16x128xf32> -> vector<16x128xf32>
    %cst_91 = arith.constant 0.000000e+00 : f32
    %cst_92 = arith.constant 2.550000e+02 : f32
    %91 = vector.broadcast %cst_91 : f32 to vector<16x128xf32>
    %92 = arith.maximumf %91, %90 : vector<16x128xf32>
    %93 = vector.broadcast %cst_92 : f32 to vector<16x128xf32>
    %94 = arith.minimumf %93, %92 : vector<16x128xf32>
    %95 = arith.truncf %94 : vector<16x128xf32> to vector<16x128xbf16>
    %c4_93 = arith.constant 4 : index
    %c0_94 = arith.constant 0 : index
    %c0_95 = arith.constant 0 : index
    %96 = vector.load %arg6[%c4_93, %c0_94, %c0_95] : memref<6x16x128xbf16, #tpu.memory_space<vmem>>, vector<1x16x128xbf16>
    %97 = vector.shape_cast %96 : vector<1x16x128xbf16> to vector<16x128xbf16>
    %98 = vector.shape_cast %95 : vector<16x128xbf16> to vector<1x16x128xbf16>
    tpu.vector_store %arg6[%c4_93, %c0_94, %c0_95], %98 {strides = array<i32>} : memref<6x16x128xbf16, #tpu.memory_space<vmem>>, vector<1x16x128xbf16>,
    %c0_96 = arith.constant 0 : index
    %c640_97 = arith.constant 640 : index
    %99 = vector.load %arg7[%c0_96, %c640_97] : memref<16x768xbf16, #tpu.memory_space<vmem>>, vector<16x128xbf16>
    %c0_98 = arith.constant 0 : index
    %c0_99 = arith.constant 0 : index
    %100 = vector.load %arg4[%c0_98, %c0_99] : memref<128x128xbf16, #tpu.memory_space<vmem>>, vector<128x128xbf16>
    %cst_100 = arith.constant dense<0.000000e+00> : vector<16x128xf32>
    %101 = tpu.matmul %99, %100, %cst_100 {dimension_numbers = #tpu.dot_dimension_numbers<[1], [0], [0], [1], [0, 0, 1, 1], [], []>} : vector<16x128xbf16>, vector<128x128xbf16>, vector<16x128xf32> -> vector<16x128xf32>
    %cst_101 = arith.constant 0.000000e+00 : f32
    %cst_102 = arith.constant 2.550000e+02 : f32
    %102 = vector.broadcast %cst_101 : f32 to vector<16x128xf32>
    %103 = arith.maximumf %102, %101 : vector<16x128xf32>
    %104 = vector.broadcast %cst_102 : f32 to vector<16x128xf32>
    %105 = arith.minimumf %104, %103 : vector<16x128xf32>
    %106 = arith.truncf %105 : vector<16x128xf32> to vector<16x128xbf16>
    %c5_103 = arith.constant 5 : index
    %c0_104 = arith.constant 0 : index
    %c0_105 = arith.constant 0 : index
    %107 = vector.load %arg6[%c5_103, %c0_104, %c0_105] : memref<6x16x128xbf16, #tpu.memory_space<vmem>>, vector<1x16x128xbf16>
    %108 = vector.shape_cast %107 : vector<1x16x128xbf16> to vector<16x128xbf16>
    %109 = vector.shape_cast %106 : vector<16x128xbf16> to vector<1x16x128xbf16>
    tpu.vector_store %arg6[%c5_103, %c0_104, %c0_105], %109 {strides = array<i32>} : memref<6x16x128xbf16, #tpu.memory_space<vmem>>, vector<1x16x128xbf16>,
    return
  }
  func.func @transform_0(%arg0: i32) -> (i32, i32) {
    %c0_i32 = arith.constant 0 : i32
    %c0_i32_0 = arith.constant 0 : i32
    %c0_i32_1 = arith.constant 0 : i32
    return %c0_i32, %c0_i32_0 : i32, i32
  }
  func.func @transform_1(%arg0: i32) -> (i32, i32) {
    %c0_i32 = arith.constant 0 : i32
    %c0_i32_0 = arith.constant 0 : i32
    %c0_i32_1 = arith.constant 0 : i32
    return %c0_i32, %c0_i32_0 : i32, i32
  }
  func.func @transform_2(%arg0: i32) -> (i32, i32) {
    %c0_i32 = arith.constant 0 : i32
    %c0_i32_0 = arith.constant 0 : i32
    %c0_i32_1 = arith.constant 0 : i32
    return %c0_i32, %c0_i32_0 : i32, i32
  }
  func.func @transform_3(%arg0: i32) -> (i32, i32) {
    %c0_i32 = arith.constant 0 : i32
    %c0_i32_0 = arith.constant 0 : i32
    %c0_i32_1 = arith.constant 0 : i32
    return %c0_i32, %c0_i32_0 : i32, i32
  }
  func.func @transform_4(%arg0: i32) -> (i32, i32, i32) {
    %c0_i32 = arith.constant 0 : i32
    %c0_i32_0 = arith.constant 0 : i32
    %c0_i32_1 = arith.constant 0 : i32
    return %arg0, %c0_i32, %c0_i32_0 : i32, i32, i32
  }
  func.func @transform_5(%arg0: i32) -> (i32, i32, i32) {
    %c0_i32 = arith.constant 0 : i32
    %c0_i32_0 = arith.constant 0 : i32
    %c0_i32_1 = arith.constant 0 : i32
    return %arg0, %c0_i32, %c0_i32_0 : i32, i32, i32
  }
}

</mosaic_0001>

<llo_original>
// kernel: tpu_custom_call.1
$region0: #{tpu_custom_call.1}
  #allocation0 [shape = 'u32[]', space=smem, size = 0x4, offset = 0x4, fixed_abs, tag = 'smem constant byte address 0x4 - core index']
  #allocation1 [shape = 'u32[144,128]{1,0:T(1,128)}', space=vmem, size = 0x12000, scoped, tag = 'internal scratch']
  #allocation2 [shape = 'bf16[16,768]{1,0:T(16,128)(2,1)}', space=vmem, size = 0x6000, scoped, tag = 'scratch operand']
  %s0 = inlined_call_operand.hbm [shape: bf16[16,16], index: 0, kind: input, shape index: {}]
  %s1 = inlined_call_operand.hbm [shape: bf16[16,16], index: 1, kind: input, shape index: {}]
  %s2 = inlined_call_operand.hbm [shape: bf16[128,128], index: 2, kind: input, shape index: {}]
  %s3 = inlined_call_operand.hbm [shape: bf16[128,128], index: 3, kind: input, shape index: {}]
  %s4 = inlined_call_operand.hbm [shape: bf16[6,16,128], index: 4, kind: input, shape index: {}]
  %s5 = inlined_call_operand.hbm [shape: bf16[6,16,128], index: 5, kind: output, shape index: {}]
  %s6 = sld [smem:[#allocation0]]
  $region50: #{tpu_custom_call.1} parent=0
    _
  %s8 = ssub.s32 1, %s6
  %s9 = scalar_select 0, %s8, %s6
  $region1: #{tpu_custom_call.1} parent=0
    #allocation3 [shape = 'u8[4096]{0}', space=vmem, size = 0x1000, scoped, tag = 'input window, operand 0, single buffered']
    #allocation4 [shape = 's32[1]{0}', space=sflag, size = 0x4, scoped, tag = 'scoped memory for tpu_custom_call.1']
    #allocation5 [shape = 's32[1]{0}', space=sflag, size = 0x4, scoped, tag = 'scoped memory for tpu_custom_call.1']
    #allocation6 [shape = 'u8[4096]{0}', space=vmem, size = 0x1000, scoped, tag = 'input window, operand 1, single buffered']
    #allocation7 [shape = 's32[1]{0}', space=sflag, size = 0x4, scoped, tag = 'scoped memory for tpu_custom_call.1']
    #allocation8 [shape = 'u8[32768]{0}', space=vmem, size = 0x8000, scoped, tag = 'input window, operand 2, single buffered']
    #allocation9 [shape = 'u8[32768]{0}', space=vmem, size = 0x8000, scoped, tag = 'input window, operand 3, single buffered']
    #allocation10 [shape = 's32[1]{0}', space=sflag, size = 0x4, scoped, tag = 'scoped memory for tpu_custom_call.1']
    #allocation11 [shape = 'u8[24576]{0}', space=vmem, size = 0x6000, scoped, tag = 'input window, operand 4, single buffered']
    #allocation12 [shape = 'u8[24576]{0}', space=vmem, size = 0x6000, scoped, tag = 'output window, operand 0, single buffered']
    %10 = vsyncpa [#allocation4], 0
    %11 = vsyncpa [#allocation7], 0
    %12 = vsyncpa [#allocation10], 0
    %13 = vsyncpa [#allocation5], 0
    // Predicated region
    $region2: #{tpu_custom_call.1} parent=1 // pred_check
      _
    $region3: #{tpu_custom_call.1} parent=1 // pred_check_branch
      %15 = sbr.rel (0) target = $region5
    $region4: #{tpu_custom_call.1} parent=1 // pred_region
      %s17 = ssub.s32 128, 128
      %18 = vsyncadd [#allocation4], %s17
      %s19 = sshll.u32 [#allocation3], 4
      %s20 = int_to_ptr.vmem [resolvable:$true] %s19
      %25 = dma.hbm_to_vmem [thread:$0]  %s0, 128, %s20, [#allocation4], 64, 64, 4
    $region5: #{tpu_custom_call.1} parent=1 // pred_fallthru
      _
    // Predicated region
    $region6: #{tpu_custom_call.1} parent=1 // pred_check
      _
    $region7: #{tpu_custom_call.1} parent=1 // pred_check_branch
      %27 = sbr.rel (0) target = $region9
    $region8: #{tpu_custom_call.1} parent=1 // pred_region
      %s29 = ssub.s32 128, 128
      %30 = vsyncadd [#allocation7], %s29
      %s31 = sshll.u32 [#allocation6], 4
      %s32 = int_to_ptr.vmem [resolvable:$true] %s31
      %37 = dma.hbm_to_vmem [thread:$0]  %s1, 128, %s32, [#allocation7], 64, 64, 4
    $region9: #{tpu_custom_call.1} parent=1 // pred_fallthru
      _
    // Predicated region
    $region10: #{tpu_custom_call.1} parent=1 // pred_check
      _
    $region11: #{tpu_custom_call.1} parent=1 // pred_check_branch
      %39 = sbr.rel (0) target = $region13
    $region12: #{tpu_custom_call.1} parent=1 // pred_region
      %s41 = ssub.s32 1024, 1024
      %42 = vsyncadd [#allocation7], %s41
      %s43 = sshll.u32 [#allocation8], 4
      %s44 = int_to_ptr.vmem [resolvable:$true] %s43
      %49 = dma.hbm_to_vmem [thread:$0]  %s2, 1024, %s44, [#allocation7], 64, 64, 4
    $region13: #{tpu_custom_call.1} parent=1 // pred_fallthru
      _
    // Predicated region
    $region14: #{tpu_custom_call.1} parent=1 // pred_check
      _
    $region15: #{tpu_custom_call.1} parent=1 // pred_check_branch
      %51 = sbr.rel (0) target = $region17
    $region16: #{tpu_custom_call.1} parent=1 // pred_region
      %s53 = ssub.s32 1024, 1024
      %54 = vsyncadd [#allocation10], %s53
      %s55 = sshll.u32 [#allocation9], 4
      %s56 = int_to_ptr.vmem [resolvable:$true] %s55
      %61 = dma.hbm_to_vmem [thread:$0]  %s3, 1024, %s56, [#allocation10], 64, 64, 4
    $region17: #{tpu_custom_call.1} parent=1 // pred_fallthru
      _
    // Predicated region
    $region18: #{tpu_custom_call.1} parent=1 // pred_check
      _
    $region19: #{tpu_custom_call.1} parent=1 // pred_check_branch
      %63 = sbr.rel (0) target = $region21
    $region20: #{tpu_custom_call.1} parent=1 // pred_region
      %s65 = ssub.s32 768, 768
      %66 = vsyncadd [#allocation10], %s65
      %s67 = sshll.u32 [#allocation11], 4
      %s68 = int_to_ptr.vmem [resolvable:$true] %s67
      %73 = dma.hbm_to_vmem [thread:$0]  %s4, 768, %s68, [#allocation10], 64, 64, 4
    $region21: #{tpu_custom_call.1} parent=1 // pred_fallthru
      _
    // Predicated region
    $region22: #{tpu_custom_call.1} parent=1 // pred_check
      _
    $region23: #{tpu_custom_call.1} parent=1 // pred_check_branch
      %75 = sbr.rel (0) target = $region25
    $region24: #{tpu_custom_call.1} parent=1 // pred_region
      %76 = dma.done [#allocation4], 128
    $region25: #{tpu_custom_call.1} parent=1 // pred_fallthru
      _
    // Predicated region
    $region26: #{tpu_custom_call.1} parent=1 // pred_check
      _
    $region27: #{tpu_custom_call.1} parent=1 // pred_check_branch
      %78 = sbr.rel (0) target = $region29
    $region28: #{tpu_custom_call.1} parent=1 // pred_region
      %79 = dma.done [#allocation7], 128
    $region29: #{tpu_custom_call.1} parent=1 // pred_fallthru
      _
    // Predicated region
    $region30: #{tpu_custom_call.1} parent=1 // pred_check
      _
    $region31: #{tpu_custom_call.1} parent=1 // pred_check_branch
      %81 = sbr.rel (0) target = $region33
    $region32: #{tpu_custom_call.1} parent=1 // pred_region
      %82 = dma.done [#allocation7], 1024
    $region33: #{tpu_custom_call.1} parent=1 // pred_fallthru
      _
    // Predicated region
    $region34: #{tpu_custom_call.1} parent=1 // pred_check
      _
    $region35: #{tpu_custom_call.1} parent=1 // pred_check_branch
      %84 = sbr.rel (0) target = $region37
    $region36: #{tpu_custom_call.1} parent=1 // pred_region
      %85 = dma.done [#allocation10], 1024
    $region37: #{tpu_custom_call.1} parent=1 // pred_fallthru
      _
    // Predicated region
    $region38: #{tpu_custom_call.1} parent=1 // pred_check
      _
    $region39: #{tpu_custom_call.1} parent=1 // pred_check_branch
      %87 = sbr.rel (0) target = $region41
    $region40: #{tpu_custom_call.1} parent=1 // pred_region
      %88 = dma.done [#allocation10], 768
    $region41: #{tpu_custom_call.1} parent=1 // pred_fallthru
      _
    %v90 = vld [vmem:[#allocation11] sm:$0xf]
    %v91 = vld [vmem:[#allocation11 + $0x4] sm:$0xf]
    %v92 = vld [vmem:[#allocation8] sm:$0xf]
    %v93 = vld [vmem:[#allocation8 + $0x4] sm:$0xf]
    %v94 = vld [vmem:[#allocation8 + $0x8] sm:$0xf]
    %v95 = vld [vmem:[#allocation8 + $0xc] sm:$0xf]
    %v96 = vld [vmem:[#allocation8 + $0x10] sm:$0xf]
    %v97 = vld [vmem:[#allocation8 + $0x14] sm:$0xf]
    %v98 = vld [vmem:[#allocation8 + $0x18] sm:$0xf]
    %v99 = vld [vmem:[#allocation8 + $0x1c] sm:$0xf]
    %v100 = vld [vmem:[#allocation8 + $0x20] sm:$0xf]
    %v101 = vld [vmem:[#allocation8 + $0x24] sm:$0xf]
    %v102 = vld [vmem:[#allocation8 + $0x28] sm:$0xf]
    %v103 = vld [vmem:[#allocation8 + $0x2c] sm:$0xf]
    %v104 = vld [vmem:[#allocation8 + $0x30] sm:$0xf]
    %v105 = vld [vmem:[#allocation8 + $0x34] sm:$0xf]
    %v106 = vld [vmem:[#allocation8 + $0x38] sm:$0xf]
    %v107 = vld [vmem:[#allocation8 + $0x3c] sm:$0xf]
    %v110 = vunpack.c.l.b16 %v90
    %v111 = vunpack.c.l.b16 %v91
    %v112 = vpack.c.b16 %v111, %v110
    %v130 = vunpack.c.l.b16 %v92
    %v131 = vunpack.c.l.b16 %v93
    %v132 = vunpack.c.l.b16 %v94
    %v133 = vunpack.c.l.b16 %v95
    %v134 = vunpack.c.l.b16 %v96
    %v135 = vunpack.c.l.b16 %v97
    %v136 = vunpack.c.l.b16 %v98
    %v137 = vunpack.c.l.b16 %v99
    %v138 = vunpack.c.l.b16 %v100
    %v139 = vunpack.c.l.b16 %v101
    %v140 = vunpack.c.l.b16 %v102
    %v141 = vunpack.c.l.b16 %v103
    %v142 = vunpack.c.l.b16 %v104
    %v143 = vunpack.c.l.b16 %v105
    %v144 = vunpack.c.l.b16 %v106
    %v145 = vunpack.c.l.b16 %v107
    %v146 = vpack.c.b16 %v131, %v130
    %v147 = vpack.c.b16 %v133, %v132
    %v148 = vpack.c.b16 %v135, %v134
    %v149 = vpack.c.b16 %v137, %v136
    %v150 = vpack.c.b16 %v139, %v138
    %v151 = vpack.c.b16 %v141, %v140
    %v152 = vpack.c.b16 %v143, %v142
    %v153 = vpack.c.b16 %v145, %v144
    %162 = vmatprep.subr.bf16.mxu0 0
    %163 = vmatpush1.bf16.msra.mxu0 %v146
    %164 = vmatprep.subr.bf16.mxu0 0
    %165 = vmatpush1.bf16.msra.mxu0 %v147
    %166 = vmatprep.subr.bf16.mxu0 0
    %167 = vmatpush1.bf16.msra.mxu0 %v148
    %168 = vmatprep.subr.bf16.mxu0 0
    %169 = vmatpush1.bf16.msra.mxu0 %v149
    %170 = vmatprep.subr.bf16.mxu0 0
    %171 = vmatpush1.bf16.msra.mxu0 %v150
    %172 = vmatprep.subr.bf16.mxu0 0
    %173 = vmatpush1.bf16.msra.mxu0 %v151
    %174 = vmatprep.subr.bf16.mxu0 0
    %175 = vmatpush1.bf16.msra.mxu0 %v152
    %176 = vmatprep.subr.bf16.mxu0 0
    %177 = vmatpush1.bf16.msra.mxu0 %v153
    %178 = vmatprep.subr.bf16.mxu0 0
    %179 = vmatpush1.bf16.msra.mxu0 0
    %180 = vmatprep.subr.bf16.mxu0 0
    %181 = vmatpush1.bf16.msra.mxu0 0
    %182 = vmatprep.subr.bf16.mxu0 0
    %183 = vmatpush1.bf16.msra.mxu0 0
    %184 = vmatprep.subr.bf16.mxu0 0
    %185 = vmatpush1.bf16.msra.mxu0 0
    %186 = vmatprep.subr.bf16.mxu0 0
    %187 = vmatpush1.bf16.msra.mxu0 0
    %188 = vmatprep.subr.bf16.mxu0 0
    %189 = vmatpush1.bf16.msra.mxu0 0
    %190 = vmatprep.subr.bf16.mxu0 0
    %191 = vmatpush1.bf16.msra.mxu0 0
    %192 = vmatprep.subr.bf16.mxu0 0
    %193 = vmatpush1.bf16.msra.mxu0 0
    %194 = vmatprep.mubr.bf16.mxu0 0
    %195 = vmatmul.mubr.bf16.gmra.mrb[0].mxu0 %v112
    %v196 = vpop.f32.mrb[0].mxu0
    %v197 = vadd.f32 0.0, %v196
    %v198 = vpop.f32.mrb[0].mxu0
    %v199 = vpop.f32.mrb[0].mxu0
    %v200 = vadd.f32 0.0, %v199
    %v201 = vpop.f32.mrb[0].mxu0
    %202 = vdwg.mxu0
    %v203 = vpack.c.bf16 %v200, %v197
    %204 = vst [vmem:[#allocation2] sm:$0xff] %v203
    %s205 = scalar_lea.vmem [#allocation11], 8
    %v206 = vld [vmem:[%s205] sm:$0xf]
    %v207 = vld [vmem:[%s205 + $0x4] sm:$0xf]
    %v208 = vld [vmem:[#allocation8] sm:$0xf]
    %v209 = vld [vmem:[#allocation8 + $0x4] sm:$0xf]
    %v210 = vld [vmem:[#allocation8 + $0x8] sm:$0xf]
    %v211 = vld [vmem:[#allocation8 + $0xc] sm:$0xf]
    %v212 = vld [vmem:[#allocation8 + $0x10] sm:$0xf]
    %v213 = vld [vmem:[#allocation8 + $0x14] sm:$0xf]
    %v214 = vld [vmem:[#allocation8 + $0x18] sm:$0xf]
    %v215 = vld [vmem:[#allocation8 + $0x1c] sm:$0xf]
    %v216 = vld [vmem:[#allocation8 + $0x20] sm:$0xf]
    %v217 = vld [vmem:[#allocation8 + $0x24] sm:$0xf]
    %v218 = vld [vmem:[#allocation8 + $0x28] sm:$0xf]
    %v219 = vld [vmem:[#allocation8 + $0x2c] sm:$0xf]
    %v220 = vld [vmem:[#allocation8 + $0x30] sm:$0xf]
    %v221 = vld [vmem:[#allocation8 + $0x34] sm:$0xf]
    %v222 = vld [vmem:[#allocation8 + $0x38] sm:$0xf]
    %v223 = vld [vmem:[#allocation8 + $0x3c] sm:$0xf]
    %v226 = vunpack.c.l.b16 %v206
    %v227 = vunpack.c.l.b16 %v207
    %v228 = vpack.c.b16 %v227, %v226
    %v246 = vunpack.c.l.b16 %v208
    %v247 = vunpack.c.l.b16 %v209
    %v248 = vunpack.c.l.b16 %v210
    %v249 = vunpack.c.l.b16 %v211
    %v250 = vunpack.c.l.b16 %v212
    %v251 = vunpack.c.l.b16 %v213
    %v252 = vunpack.c.l.b16 %v214
    %v253 = vunpack.c.l.b16 %v215
    %v254 = vunpack.c.l.b16 %v216
    %v255 = vunpack.c.l.b16 %v217
    %v256 = vunpack.c.l.b16 %v218
    %v257 = vunpack.c.l.b16 %v219
    %v258 = vunpack.c.l.b16 %v220
    %v259 = vunpack.c.l.b16 %v221
    %v260 = vunpack.c.l.b16 %v222
    %v261 = vunpack.c.l.b16 %v223
    %v262 = vpack.c.b16 %v247, %v246
    %v263 = vpack.c.b16 %v249, %v248
    %v264 = vpack.c.b16 %v251, %v250
    %v265 = vpack.c.b16 %v253, %v252
    %v266 = vpack.c.b16 %v255, %v254
    %v267 = vpack.c.b16 %v257, %v256
    %v268 = vpack.c.b16 %v259, %v258
    %v269 = vpack.c.b16 %v261, %v260
    %278 = vmatprep.subr.bf16.mxu0 0
    %279 = vmatpush1.bf16.msra.mxu0 %v262
    %280 = vmatprep.subr.bf16.mxu0 0
    %281 = vmatpush1.bf16.msra.mxu0 %v263
    %282 = vmatprep.subr.bf16.mxu0 0
    %283 = vmatpush1.bf16.msra.mxu0 %v264
    %284 = vmatprep.subr.bf16.mxu0 0
    %285 = vmatpush1.bf16.msra.mxu0 %v265
    %286 = vmatprep.subr.bf16.mxu0 0
    %287 = vmatpush1.bf16.msra.mxu0 %v266
    %288 = vmatprep.subr.bf16.mxu0 0
    %289 = vmatpush1.bf16.msra.mxu0 %v267
    %290 = vmatprep.subr.bf16.mxu0 0
    %291 = vmatpush1.bf16.msra.mxu0 %v268
    %292 = vmatprep.subr.bf16.mxu0 0
    %293 = vmatpush1.bf16.msra.mxu0 %v269
    %294 = vmatprep.subr.bf16.mxu0 0
    %295 = vmatpush1.bf16.msra.mxu0 0
    %296 = vmatprep.subr.bf16.mxu0 0
    %297 = vmatpush1.bf16.msra.mxu0 0
    %298 = vmatprep.subr.bf16.mxu0 0
    %299 = vmatpush1.bf16.msra.mxu0 0
    %300 = vmatprep.subr.bf16.mxu0 0
    %301 = vmatpush1.bf16.msra.mxu0 0
    %302 = vmatprep.subr.bf16.mxu0 0
    %303 = vmatpush1.bf16.msra.mxu0 0
    %304 = vmatprep.subr.bf16.mxu0 0
    %305 = vmatpush1.bf16.msra.mxu0 0
    %306 = vmatprep.subr.bf16.mxu0 0
    %307 = vmatpush1.bf16.msra.mxu0 0
    %308 = vmatprep.subr.bf16.mxu0 0
    %309 = vmatpush1.bf16.msra.mxu0 0
    %310 = vmatprep.mubr.bf16.mxu0 0
    %311 = vmatmul.mubr.bf16.gmra.mrb[0].mxu0 %v228
    %v312 = vpop.f32.mrb[0].mxu0
    %v313 = vadd.f32 0.0, %v312
    %v314 = vpop.f32.mrb[0].mxu0
    %v315 = vpop.f32.mrb[0].mxu0
    %v316 = vadd.f32 0.0, %v315
    %v317 = vpop.f32.mrb[0].mxu0
    %318 = vdwg.mxu0
    %v319 = vpack.c.bf16 %v316, %v313
    %320 = vst [vmem:[#allocation2 + $0x8] sm:$0xff] %v319
    %s321 = scalar_lea.vmem [#allocation11], 16
    %v322 = vld [vmem:[%s321] sm:$0xf]
    %v323 = vld [vmem:[%s321 + $0x4] sm:$0xf]
    %v324 = vld [vmem:[#allocation8] sm:$0xf]
    %v325 = vld [vmem:[#allocation8 + $0x4] sm:$0xf]
    %v326 = vld [vmem:[#allocation8 + $0x8] sm:$0xf]
    %v327 = vld [vmem:[#allocation8 + $0xc] sm:$0xf]
    %v328 = vld [vmem:[#allocation8 + $0x10] sm:$0xf]
    %v329 = vld [vmem:[#allocation8 + $0x14] sm:$0xf]
    %v330 = vld [vmem:[#allocation8 + $0x18] sm:$0xf]
    %v331 = vld [vmem:[#allocation8 + $0x1c] sm:$0xf]
    %v332 = vld [vmem:[#allocation8 + $0x20] sm:$0xf]
    %v333 = vld [vmem:[#allocation8 + $0x24] sm:$0xf]
    %v334 = vld [vmem:[#allocation8 + $0x28] sm:$0xf]
    %v335 = vld [vmem:[#allocation8 + $0x2c] sm:$0xf]
    %v336 = vld [vmem:[#allocation8 + $0x30] sm:$0xf]
    %v337 = vld [vmem:[#allocation8 + $0x34] sm:$0xf]
    %v338 = vld [vmem:[#allocation8 + $0x38] sm:$0xf]
    %v339 = vld [vmem:[#allocation8 + $0x3c] sm:$0xf]
    %v342 = vunpack.c.l.b16 %v322
    %v343 = vunpack.c.l.b16 %v323
    %v344 = vpack.c.b16 %v343, %v342
    %v362 = vunpack.c.l.b16 %v324
    %v363 = vunpack.c.l.b16 %v325
    %v364 = vunpack.c.l.b16 %v326
    %v365 = vunpack.c.l.b16 %v327
    %v366 = vunpack.c.l.b16 %v328
    %v367 = vunpack.c.l.b16 %v329
    %v368 = vunpack.c.l.b16 %v330
    %v369 = vunpack.c.l.b16 %v331
    %v370 = vunpack.c.l.b16 %v332
    %v371 = vunpack.c.l.b16 %v333
    %v372 = vunpack.c.l.b16 %v334
    %v373 = vunpack.c.l.b16 %v335
    %v374 = vunpack.c.l.b16 %v336
    %v375 = vunpack.c.l.b16 %v337
    %v376 = vunpack.c.l.b16 %v338
    %v377 = vunpack.c.l.b16 %v339
    %v378 = vpack.c.b16 %v363, %v362
    %v379 = vpack.c.b16 %v365, %v364
    %v380 = vpack.c.b16 %v367, %v366
    %v381 = vpack.c.b16 %v369, %v368
    %v382 = vpack.c.b16 %v371, %v370
    %v383 = vpack.c.b16 %v373, %v372
    %v384 = vpack.c.b16 %v375, %v374
    %v385 = vpack.c.b16 %v377, %v376
    %394 = vmatprep.subr.bf16.mxu0 0
    %395 = vmatpush1.bf16.msra.mxu0 %v378
    %396 = vmatprep.subr.bf16.mxu0 0
    %397 = vmatpush1.bf16.msra.mxu0 %v379
    %398 = vmatprep.subr.bf16.mxu0 0
    %399 = vmatpush1.bf16.msra.mxu0 %v380
    %400 = vmatprep.subr.bf16.mxu0 0
    %401 = vmatpush1.bf16.msra.mxu0 %v381
    %402 = vmatprep.subr.bf16.mxu0 0
    %403 = vmatpush1.bf16.msra.mxu0 %v382
    %404 = vmatprep.subr.bf16.mxu0 0
    %405 = vmatpush1.bf16.msra.mxu0 %v383
    %406 = vmatprep.subr.bf16.mxu0 0
    %407 = vmatpush1.bf16.msra.mxu0 %v384
    %408 = vmatprep.subr.bf16.mxu0 0
    %409 = vmatpush1.bf16.msra.mxu0 %v385
    %410 = vmatprep.subr.bf16.mxu0 0
    %411 = vmatpush1.bf16.msra.mxu0 0
    %412 = vmatprep.subr.bf16.mxu0 0
    %413 = vmatpush1.bf16.msra.mxu0 0
    %414 = vmatprep.subr.bf16.mxu0 0
    %415 = vmatpush1.bf16.msra.mxu0 0
    %416 = vmatprep.subr.bf16.mxu0 0
    %417 = vmatpush1.bf16.msra.mxu0 0
    %418 = vmatprep.subr.bf16.mxu0 0
    %419 = vmatpush1.bf16.msra.mxu0 0
    %420 = vmatprep.subr.bf16.mxu0 0
    %421 = vmatpush1.bf16.msra.mxu0 0
    %422 = vmatprep.subr.bf16.mxu0 0
    %423 = vmatpush1.bf16.msra.mxu0 0
    %424 = vmatprep.subr.bf16.mxu0 0
    %425 = vmatpush1.bf16.msra.mxu0 0
    %426 = vmatprep.mubr.bf16.mxu0 0
    %427 = vmatmul.mubr.bf16.gmra.mrb[0].mxu0 %v344
    %v428 = vpop.f32.mrb[0].mxu0
    %v429 = vadd.f32 0.0, %v428
    %v430 = vpop.f32.mrb[0].mxu0
    %v431 = vpop.f32.mrb[0].mxu0
    %v432 = vadd.f32 0.0, %v431
    %v433 = vpop.f32.mrb[0].mxu0
    %434 = vdwg.mxu0
    %v435 = vpack.c.bf16 %v432, %v429
    %436 = vst [vmem:[#allocation2 + $0x10] sm:$0xff] %v435
    %s437 = scalar_lea.vmem [#allocation11], 24
    %v438 = vld [vmem:[%s437] sm:$0xf]
    %v439 = vld [vmem:[%s437 + $0x4] sm:$0xf]
    %v440 = vld [vmem:[#allocation8] sm:$0xf]
    %v441 = vld [vmem:[#allocation8 + $0x4] sm:$0xf]
    %v442 = vld [vmem:[#allocation8 + $0x8] sm:$0xf]
    %v443 = vld [vmem:[#allocation8 + $0xc] sm:$0xf]
    %v444 = vld [vmem:[#allocation8 + $0x10] sm:$0xf]
    %v445 = vld [vmem:[#allocation8 + $0x14] sm:$0xf]
    %v446 = vld [vmem:[#allocation8 + $0x18] sm:$0xf]
    %v447 = vld [vmem:[#allocation8 + $0x1c] sm:$0xf]
    %v448 = vld [vmem:[#allocation8 + $0x20] sm:$0xf]
    %v449 = vld [vmem:[#allocation8 + $0x24] sm:$0xf]
    %v450 = vld [vmem:[#allocation8 + $0x28] sm:$0xf]
    %v451 = vld [vmem:[#allocation8 + $0x2c] sm:$0xf]
    %v452 = vld [vmem:[#allocation8 + $0x30] sm:$0xf]
    %v453 = vld [vmem:[#allocation8 + $0x34] sm:$0xf]
    %v454 = vld [vmem:[#allocation8 + $0x38] sm:$0xf]
    %v455 = vld [vmem:[#allocation8 + $0x3c] sm:$0xf]
    %v458 = vunpack.c.l.b16 %v438
    %v459 = vunpack.c.l.b16 %v439
    %v460 = vpack.c.b16 %v459, %v458
    %v478 = vunpack.c.l.b16 %v440
    %v479 = vunpack.c.l.b16 %v441
    %v480 = vunpack.c.l.b16 %v442
    %v481 = vunpack.c.l.b16 %v443
    %v482 = vunpack.c.l.b16 %v444
    %v483 = vunpack.c.l.b16 %v445
    %v484 = vunpack.c.l.b16 %v446
    %v485 = vunpack.c.l.b16 %v447
    %v486 = vunpack.c.l.b16 %v448
    %v487 = vunpack.c.l.b16 %v449
    %v488 = vunpack.c.l.b16 %v450
    %v489 = vunpack.c.l.b16 %v451
    %v490 = vunpack.c.l.b16 %v452
    %v491 = vunpack.c.l.b16 %v453
    %v492 = vunpack.c.l.b16 %v454
    %v493 = vunpack.c.l.b16 %v455
    %v494 = vpack.c.b16 %v479, %v478
    %v495 = vpack.c.b16 %v481, %v480
    %v496 = vpack.c.b16 %v483, %v482
    %v497 = vpack.c.b16 %v485, %v484
    %v498 = vpack.c.b16 %v487, %v486
    %v499 = vpack.c.b16 %v489, %v488
    %v500 = vpack.c.b16 %v491, %v490
    %v501 = vpack.c.b16 %v493, %v492
    %510 = vmatprep.subr.bf16.mxu0 0
    %511 = vmatpush1.bf16.msra.mxu0 %v494
    %512 = vmatprep.subr.bf16.mxu0 0
    %513 = vmatpush1.bf16.msra.mxu0 %v495
    %514 = vmatprep.subr.bf16.mxu0 0
    %515 = vmatpush1.bf16.msra.mxu0 %v496
    %516 = vmatprep.subr.bf16.mxu0 0
    %517 = vmatpush1.bf16.msra.mxu0 %v497
    %518 = vmatprep.subr.bf16.mxu0 0
    %519 = vmatpush1.bf16.msra.mxu0 %v498
    %520 = vmatprep.subr.bf16.mxu0 0
    %521 = vmatpush1.bf16.msra.mxu0 %v499
    %522 = vmatprep.subr.bf16.mxu0 0
    %523 = vmatpush1.bf16.msra.mxu0 %v500
    %524 = vmatprep.subr.bf16.mxu0 0
    %525 = vmatpush1.bf16.msra.mxu0 %v501
    %526 = vmatprep.subr.bf16.mxu0 0
    %527 = vmatpush1.bf16.msra.mxu0 0
    %528 = vmatprep.subr.bf16.mxu0 0
    %529 = vmatpush1.bf16.msra.mxu0 0
    %530 = vmatprep.subr.bf16.mxu0 0
    %531 = vmatpush1.bf16.msra.mxu0 0
    %532 = vmatprep.subr.bf16.mxu0 0
    %533 = vmatpush1.bf16.msra.mxu0 0
    %534 = vmatprep.subr.bf16.mxu0 0
    %535 = vmatpush1.bf16.msra.mxu0 0
    %536 = vmatprep.subr.bf16.mxu0 0
    %537 = vmatpush1.bf16.msra.mxu0 0
    %538 = vmatprep.subr.bf16.mxu0 0
    %539 = vmatpush1.bf16.msra.mxu0 0
    %540 = vmatprep.subr.bf16.mxu0 0
    %541 = vmatpush1.bf16.msra.mxu0 0
    %542 = vmatprep.mubr.bf16.mxu0 0
    %543 = vmatmul.mubr.bf16.gmra.mrb[0].mxu0 %v460
    %v544 = vpop.f32.mrb[0].mxu0
    %v545 = vadd.f32 0.0, %v544
    %v546 = vpop.f32.mrb[0].mxu0
    %v547 = vpop.f32.mrb[0].mxu0
    %v548 = vadd.f32 0.0, %v547
    %v549 = vpop.f32.mrb[0].mxu0
    %550 = vdwg.mxu0
    %v551 = vpack.c.bf16 %v548, %v545
    %552 = vst [vmem:[#allocation2 + $0x18] sm:$0xff] %v551
    %s553 = scalar_lea.vmem [#allocation11], 32
    %v554 = vld [vmem:[%s553] sm:$0xf]
    %v555 = vld [vmem:[%s553 + $0x4] sm:$0xf]
    %v556 = vld [vmem:[#allocation8] sm:$0xf]
    %v557 = vld [vmem:[#allocation8 + $0x4] sm:$0xf]
    %v558 = vld [vmem:[#allocation8 + $0x8] sm:$0xf]
    %v559 = vld [vmem:[#allocation8 + $0xc] sm:$0xf]
    %v560 = vld [vmem:[#allocation8 + $0x10] sm:$0xf]
    %v561 = vld [vmem:[#allocation8 + $0x14] sm:$0xf]
    %v562 = vld [vmem:[#allocation8 + $0x18] sm:$0xf]
    %v563 = vld [vmem:[#allocation8 + $0x1c] sm:$0xf]
    %v564 = vld [vmem:[#allocation8 + $0x20] sm:$0xf]
    %v565 = vld [vmem:[#allocation8 + $0x24] sm:$0xf]
    %v566 = vld [vmem:[#allocation8 + $0x28] sm:$0xf]
    %v567 = vld [vmem:[#allocation8 + $0x2c] sm:$0xf]
    %v568 = vld [vmem:[#allocation8 + $0x30] sm:$0xf]
    %v569 = vld [vmem:[#allocation8 + $0x34] sm:$0xf]
    %v570 = vld [vmem:[#allocation8 + $0x38] sm:$0xf]
    %v571 = vld [vmem:[#allocation8 + $0x3c] sm:$0xf]
    %v574 = vunpack.c.l.b16 %v554
    %v575 = vunpack.c.l.b16 %v555
    %v576 = vpack.c.b16 %v575, %v574
    %v594 = vunpack.c.l.b16 %v556
    %v595 = vunpack.c.l.b16 %v557
    %v596 = vunpack.c.l.b16 %v558
    %v597 = vunpack.c.l.b16 %v559
    %v598 = vunpack.c.l.b16 %v560
    %v599 = vunpack.c.l.b16 %v561
    %v600 = vunpack.c.l.b16 %v562
    %v601 = vunpack.c.l.b16 %v563
    %v602 = vunpack.c.l.b16 %v564
    %v603 = vunpack.c.l.b16 %v565
    %v604 = vunpack.c.l.b16 %v566
    %v605 = vunpack.c.l.b16 %v567
    %v606 = vunpack.c.l.b16 %v568
    %v607 = vunpack.c.l.b16 %v569
    %v608 = vunpack.c.l.b16 %v570
    %v609 = vunpack.c.l.b16 %v571
    %v610 = vpack.c.b16 %v595, %v594
    %v611 = vpack.c.b16 %v597, %v596
    %v612 = vpack.c.b16 %v599, %v598
    %v613 = vpack.c.b16 %v601, %v600
    %v614 = vpack.c.b16 %v603, %v602
    %v615 = vpack.c.b16 %v605, %v604
    %v616 = vpack.c.b16 %v607, %v606
    %v617 = vpack.c.b16 %v609, %v608
    %626 = vmatprep.subr.bf16.mxu0 0
    %627 = vmatpush1.bf16.msra.mxu0 %v610
    %628 = vmatprep.subr.bf16.mxu0 0
    %629 = vmatpush1.bf16.msra.mxu0 %v611
    %630 = vmatprep.subr.bf16.mxu0 0
    %631 = vmatpush1.bf16.msra.mxu0 %v612
    %632 = vmatprep.subr.bf16.mxu0 0
    %633 = vmatpush1.bf16.msra.mxu0 %v613
    %634 = vmatprep.subr.bf16.mxu0 0
    %635 = vmatpush1.bf16.msra.mxu0 %v614
    %636 = vmatprep.subr.bf16.mxu0 0
    %637 = vmatpush1.bf16.msra.mxu0 %v615
    %638 = vmatprep.subr.bf16.mxu0 0
    %639 = vmatpush1.bf16.msra.mxu0 %v616
    %640 = vmatprep.subr.bf16.mxu0 0
    %641 = vmatpush1.bf16.msra.mxu0 %v617
    %642 = vmatprep.subr.bf16.mxu0 0
    %643 = vmatpush1.bf16.msra.mxu0 0
    %644 = vmatprep.subr.bf16.mxu0 0
    %645 = vmatpush1.bf16.msra.mxu0 0
    %646 = vmatprep.subr.bf16.mxu0 0
    %647 = vmatpush1.bf16.msra.mxu0 0
    %648 = vmatprep.subr.bf16.mxu0 0
    %649 = vmatpush1.bf16.msra.mxu0 0
    %650 = vmatprep.subr.bf16.mxu0 0
    %651 = vmatpush1.bf16.msra.mxu0 0
    %652 = vmatprep.subr.bf16.mxu0 0
    %653 = vmatpush1.bf16.msra.mxu0 0
    %654 = vmatprep.subr.bf16.mxu0 0
    %655 = vmatpush1.bf16.msra.mxu0 0
    %656 = vmatprep.subr.bf16.mxu0 0
    %657 = vmatpush1.bf16.msra.mxu0 0
    %658 = vmatprep.mubr.bf16.mxu0 0
    %659 = vmatmul.mubr.bf16.gmra.mrb[0].mxu0 %v576
    %v660 = vpop.f32.mrb[0].mxu0
    %v661 = vadd.f32 0.0, %v660
    %v662 = vpop.f32.mrb[0].mxu0
    %v663 = vpop.f32.mrb[0].mxu0
    %v664 = vadd.f32 0.0, %v663
    %v665 = vpop.f32.mrb[0].mxu0
    %666 = vdwg.mxu0
    %v667 = vpack.c.bf16 %v664, %v661
    %668 = vst [vmem:[#allocation2 + $0x20] sm:$0xff] %v667
    %s669 = scalar_lea.vmem [#allocation11], 40
    %v670 = vld [vmem:[%s669] sm:$0xf]
    %v671 = vld [vmem:[%s669 + $0x4] sm:$0xf]
    %v672 = vld [vmem:[#allocation8] sm:$0xf]
    %v673 = vld [vmem:[#allocation8 + $0x4] sm:$0xf]
    %v674 = vld [vmem:[#allocation8 + $0x8] sm:$0xf]
    %v675 = vld [vmem:[#allocation8 + $0xc] sm:$0xf]
    %v676 = vld [vmem:[#allocation8 + $0x10] sm:$0xf]
    %v677 = vld [vmem:[#allocation8 + $0x14] sm:$0xf]
    %v678 = vld [vmem:[#allocation8 + $0x18] sm:$0xf]
    %v679 = vld [vmem:[#allocation8 + $0x1c] sm:$0xf]
    %v680 = vld [vmem:[#allocation8 + $0x20] sm:$0xf]
    %v681 = vld [vmem:[#allocation8 + $0x24] sm:$0xf]
    %v682 = vld [vmem:[#allocation8 + $0x28] sm:$0xf]
    %v683 = vld [vmem:[#allocation8 + $0x2c] sm:$0xf]
    %v684 = vld [vmem:[#allocation8 + $0x30] sm:$0xf]
    %v685 = vld [vmem:[#allocation8 + $0x34] sm:$0xf]
    %v686 = vld [vmem:[#allocation8 + $0x38] sm:$0xf]
    %v687 = vld [vmem:[#allocation8 + $0x3c] sm:$0xf]
    %v690 = vunpack.c.l.b16 %v670
    %v691 = vunpack.c.l.b16 %v671
    %v692 = vpack.c.b16 %v691, %v690
    %v710 = vunpack.c.l.b16 %v672
    %v711 = vunpack.c.l.b16 %v673
    %v712 = vunpack.c.l.b16 %v674
    %v713 = vunpack.c.l.b16 %v675
    %v714 = vunpack.c.l.b16 %v676
    %v715 = vunpack.c.l.b16 %v677
    %v716 = vunpack.c.l.b16 %v678
    %v717 = vunpack.c.l.b16 %v679
    %v718 = vunpack.c.l.b16 %v680
    %v719 = vunpack.c.l.b16 %v681
    %v720 = vunpack.c.l.b16 %v682
    %v721 = vunpack.c.l.b16 %v683
    %v722 = vunpack.c.l.b16 %v684
    %v723 = vunpack.c.l.b16 %v685
    %v724 = vunpack.c.l.b16 %v686
    %v725 = vunpack.c.l.b16 %v687
    %v726 = vpack.c.b16 %v711, %v710
    %v727 = vpack.c.b16 %v713, %v712
    %v728 = vpack.c.b16 %v715, %v714
    %v729 = vpack.c.b16 %v717, %v716
    %v730 = vpack.c.b16 %v719, %v718
    %v731 = vpack.c.b16 %v721, %v720
    %v732 = vpack.c.b16 %v723, %v722
    %v733 = vpack.c.b16 %v725, %v724
    %742 = vmatprep.subr.bf16.mxu0 0
    %743 = vmatpush1.bf16.msra.mxu0 %v726
    %744 = vmatprep.subr.bf16.mxu0 0
    %745 = vmatpush1.bf16.msra.mxu0 %v727
    %746 = vmatprep.subr.bf16.mxu0 0
    %747 = vmatpush1.bf16.msra.mxu0 %v728
    %748 = vmatprep.subr.bf16.mxu0 0
    %749 = vmatpush1.bf16.msra.mxu0 %v729
    %750 = vmatprep.subr.bf16.mxu0 0
    %751 = vmatpush1.bf16.msra.mxu0 %v730
    %752 = vmatprep.subr.bf16.mxu0 0
    %753 = vmatpush1.bf16.msra.mxu0 %v731
    %754 = vmatprep.subr.bf16.mxu0 0
    %755 = vmatpush1.bf16.msra.mxu0 %v732
    %756 = vmatprep.subr.bf16.mxu0 0
    %757 = vmatpush1.bf16.msra.mxu0 %v733
    %758 = vmatprep.subr.bf16.mxu0 0
    %759 = vmatpush1.bf16.msra.mxu0 0
    %760 = vmatprep.subr.bf16.mxu0 0
    %761 = vmatpush1.bf16.msra.mxu0 0
    %762 = vmatprep.subr.bf16.mxu0 0
    %763 = vmatpush1.bf16.msra.mxu0 0
    %764 = vmatprep.subr.bf16.mxu0 0
    %765 = vmatpush1.bf16.msra.mxu0 0
    %766 = vmatprep.subr.bf16.mxu0 0
    %767 = vmatpush1.bf16.msra.mxu0 0
    %768 = vmatprep.subr.bf16.mxu0 0
    %769 = vmatpush1.bf16.msra.mxu0 0
    %770 = vmatprep.subr.bf16.mxu0 0
    %771 = vmatpush1.bf16.msra.mxu0 0
    %772 = vmatprep.subr.bf16.mxu0 0
    %773 = vmatpush1.bf16.msra.mxu0 0
    %774 = vmatprep.mubr.bf16.mxu0 0
    %775 = vmatmul.mubr.bf16.gmra.mrb[0].mxu0 %v692
    %v776 = vpop.f32.mrb[0].mxu0
    %v777 = vadd.f32 0.0, %v776
    %v778 = vpop.f32.mrb[0].mxu0
    %v779 = vpop.f32.mrb[0].mxu0
    %v780 = vadd.f32 0.0, %v779
    %v781 = vpop.f32.mrb[0].mxu0
    %782 = vdwg.mxu0
    %v783 = vpack.c.bf16 %v780, %v777
    %784 = vst [vmem:[#allocation2 + $0x28] sm:$0xff] %v783
    %v785 = vld [vmem:[#allocation3] sm:$0xf]
    %v786 = vld [vmem:[#allocation3 + $0x4] sm:$0xf]
    %v787 = vld [vmem:[#allocation2] sm:$0xff]
    %v788 = vld [vmem:[#allocation2 + $0x8] sm:$0xff]
    %v789 = vld [vmem:[#allocation2 + $0x10] sm:$0xff]
    %v790 = vld [vmem:[#allocation2 + $0x18] sm:$0xff]
    %v791 = vld [vmem:[#allocation2 + $0x20] sm:$0xff]
    %v792 = vld [vmem:[#allocation2 + $0x28] sm:$0xff]
    %v795 = vunpack.c.l.b16 %v785
    %v796 = vunpack.c.l.b16 %v786
    %v797 = vpack.c.b16 %v796, %v795
    %vm798 = vcmask 130048
    %v800 = vsel %vm798, %v797, 0
    %802 = vmatprep.subr.bf16.mxu0 %v788
    %803 = vmatpush1.bf16.msra.mxu0 %v787
    %804 = vmatprep.subr.bf16.mxu0 0
    %805 = vmatpush1.bf16.msra.mxu0 0
    %806 = vmatprep.subr.bf16.mxu0 0
    %807 = vmatpush1.bf16.msra.mxu0 0
    %808 = vmatprep.subr.bf16.mxu0 0
    %809 = vmatpush1.bf16.msra.mxu0 0
    %810 = vmatprep.subr.bf16.mxu0 0
    %811 = vmatpush1.bf16.msra.mxu0 0
    %812 = vmatprep.subr.bf16.mxu0 0
    %813 = vmatpush1.bf16.msra.mxu0 0
    %814 = vmatprep.subr.bf16.mxu0 0
    %815 = vmatpush1.bf16.msra.mxu0 0
    %816 = vmatprep.subr.bf16.mxu0 0
    %817 = vmatpush1.bf16.msra.mxu0 0
    %818 = vmatprep.subr.bf16.mxu0 0
    %819 = vmatpush1.bf16.msra.mxu0 0
    %820 = vmatprep.subr.bf16.mxu0 0
    %821 = vmatpush1.bf16.msra.mxu0 0
    %822 = vmatprep.subr.bf16.mxu0 0
    %823 = vmatpush1.bf16.msra.mxu0 0
    %824 = vmatprep.subr.bf16.mxu0 0
    %825 = vmatpush1.bf16.msra.mxu0 0
    %826 = vmatprep.subr.bf16.mxu0 0
    %827 = vmatpush1.bf16.msra.mxu0 0
    %828 = vmatprep.subr.bf16.mxu0 0
    %829 = vmatpush1.bf16.msra.mxu0 0
    %830 = vmatprep.subr.bf16.mxu0 0
    %831 = vmatpush1.bf16.msra.mxu0 0
    %832 = vmatprep.subr.bf16.mxu0 0
    %833 = vmatpush1.bf16.msra.mxu0 0
    %834 = vmatprep.mubr.bf16.mxu0 0
    %835 = vmatmul.mubr.bf16.gmra.mrb[0].mxu0 %v800
    %v836 = vpop.f32.mrb[0].mxu0
    %v837 = vadd.f32 0.0, %v836
    %v838 = vpop.f32.mrb[0].mxu0
    %v839 = vadd.f32 0.0, %v838
    %v840 = vpop.f32.mrb[0].mxu0
    %v841 = vadd.f32 0.0, %v840
    %v842 = vpop.f32.mrb[0].mxu0
    %v843 = vadd.f32 0.0, %v842
    %844 = vdwg.mxu0
    %845 = vmatprep.subr.bf16.mxu0 %v790
    %846 = vmatpush1.bf16.msra.mxu0 %v789
    %847 = vmatprep.subr.bf16.mxu0 0
    %848 = vmatpush1.bf16.msra.mxu0 0
    %849 = vmatprep.subr.bf16.mxu0 0
    %850 = vmatpush1.bf16.msra.mxu0 0
    %851 = vmatprep.subr.bf16.mxu0 0
    %852 = vmatpush1.bf16.msra.mxu0 0
    %853 = vmatprep.subr.bf16.mxu0 0
    %854 = vmatpush1.bf16.msra.mxu0 0
    %855 = vmatprep.subr.bf16.mxu0 0
    %856 = vmatpush1.bf16.msra.mxu0 0
    %857 = vmatprep.subr.bf16.mxu0 0
    %858 = vmatpush1.bf16.msra.mxu0 0
    %859 = vmatprep.subr.bf16.mxu0 0
    %860 = vmatpush1.bf16.msra.mxu0 0
    %861 = vmatprep.subr.bf16.mxu0 0
    %862 = vmatpush1.bf16.msra.mxu0 0
    %863 = vmatprep.subr.bf16.mxu0 0
    %864 = vmatpush1.bf16.msra.mxu0 0
    %865 = vmatprep.subr.bf16.mxu0 0
    %866 = vmatpush1.bf16.msra.mxu0 0
    %867 = vmatprep.subr.bf16.mxu0 0
    %868 = vmatpush1.bf16.msra.mxu0 0
    %869 = vmatprep.subr.bf16.mxu0 0
    %870 = vmatpush1.bf16.msra.mxu0 0
    %871 = vmatprep.subr.bf16.mxu0 0
    %872 = vmatpush1.bf16.msra.mxu0 0
    %873 = vmatprep.subr.bf16.mxu0 0
    %874 = vmatpush1.bf16.msra.mxu0 0
    %875 = vmatprep.subr.bf16.mxu0 0
    %876 = vmatpush1.bf16.msra.mxu0 0
    %877 = vmatprep.mubr.bf16.mxu0 0
    %878 = vmatmul.mubr.bf16.gmra.mrb[0].mxu0 %v800
    %v879 = vpop.f32.mrb[0].mxu0
    %v880 = vadd.f32 0.0, %v879
    %v881 = vpop.f32.mrb[0].mxu0
    %v882 = vadd.f32 0.0, %v881
    %v883 = vpop.f32.mrb[0].mxu0
    %v884 = vadd.f32 0.0, %v883
    %v885 = vpop.f32.mrb[0].mxu0
    %v886 = vadd.f32 0.0, %v885
    %887 = vdwg.mxu0
    %888 = vmatprep.subr.bf16.mxu0 %v792
    %889 = vmatpush1.bf16.msra.mxu0 %v791
    %890 = vmatprep.subr.bf16.mxu0 0
    %891 = vmatpush1.bf16.msra.mxu0 0
    %892 = vmatprep.subr.bf16.mxu0 0
    %893 = vmatpush1.bf16.msra.mxu0 0
    %894 = vmatprep.subr.bf16.mxu0 0
    %895 = vmatpush1.bf16.msra.mxu0 0
    %896 = vmatprep.subr.bf16.mxu0 0
    %897 = vmatpush1.bf16.msra.mxu0 0
    %898 = vmatprep.subr.bf16.mxu0 0
    %899 = vmatpush1.bf16.msra.mxu0 0
    %900 = vmatprep.subr.bf16.mxu0 0
    %901 = vmatpush1.bf16.msra.mxu0 0
    %902 = vmatprep.subr.bf16.mxu0 0
    %903 = vmatpush1.bf16.msra.mxu0 0
    %904 = vmatprep.subr.bf16.mxu0 0
    %905 = vmatpush1.bf16.msra.mxu0 0
    %906 = vmatprep.subr.bf16.mxu0 0
    %907 = vmatpush1.bf16.msra.mxu0 0
    %908 = vmatprep.subr.bf16.mxu0 0
    %909 = vmatpush1.bf16.msra.mxu0 0
    %910 = vmatprep.subr.bf16.mxu0 0
    %911 = vmatpush1.bf16.msra.mxu0 0
    %912 = vmatprep.subr.bf16.mxu0 0
    %913 = vmatpush1.bf16.msra.mxu0 0
    %914 = vmatprep.subr.bf16.mxu0 0
    %915 = vmatpush1.bf16.msra.mxu0 0
    %916 = vmatprep.subr.bf16.mxu0 0
    %917 = vmatpush1.bf16.msra.mxu0 0
    %918 = vmatprep.subr.bf16.mxu0 0
    %919 = vmatpush1.bf16.msra.mxu0 0
    %920 = vmatprep.mubr.bf16.mxu0 0
    %921 = vmatmul.mubr.bf16.gmra.mrb[0].mxu0 %v800
    %v922 = vpop.f32.mrb[0].mxu0
    %v923 = vadd.f32 0.0, %v922
    %v924 = vpop.f32.mrb[0].mxu0
    %v925 = vadd.f32 0.0, %v924
    %v926 = vpop.f32.mrb[0].mxu0
    %v927 = vadd.f32 0.0, %v926
    %v928 = vpop.f32.mrb[0].mxu0
    %v929 = vadd.f32 0.0, %v928
    %930 = vdwg.mxu0
    %v931 = vpack.c.bf16 %v841, %v837
    %v932 = vpack.c.bf16 %v843, %v839
    %v933 = vpack.c.bf16 %v884, %v880
    %v934 = vpack.c.bf16 %v886, %v882
    %v935 = vpack.c.bf16 %v927, %v923
    %v936 = vpack.c.bf16 %v929, %v925
    %v937 = vld [vmem:[#allocation6] sm:$0xf]
    %v938 = vld [vmem:[#allocation6 + $0x4] sm:$0xf]
    %v941 = vunpack.c.l.b16 %v937
    %v942 = vunpack.c.l.b16 %v938
    %v943 = vpack.c.b16 %v942, %v941
    %v945 = vsel %vm798, %v943, 0
    %947 = vmatprep.subr.bf16.mxu0 %v932
    %948 = vmatpush1.bf16.msra.mxu0 %v931
    %949 = vmatprep.subr.bf16.mxu0 0
    %950 = vmatpush1.bf16.msra.mxu0 0
    %951 = vmatprep.subr.bf16.mxu0 0
    %952 = vmatpush1.bf16.msra.mxu0 0
    %953 = vmatprep.subr.bf16.mxu0 0
    %954 = vmatpush1.bf16.msra.mxu0 0
    %955 = vmatprep.subr.bf16.mxu0 0
    %956 = vmatpush1.bf16.msra.mxu0 0
    %957 = vmatprep.subr.bf16.mxu0 0
    %958 = vmatpush1.bf16.msra.mxu0 0
    %959 = vmatprep.subr.bf16.mxu0 0
    %960 = vmatpush1.bf16.msra.mxu0 0
    %961 = vmatprep.subr.bf16.mxu0 0
    %962 = vmatpush1.bf16.msra.mxu0 0
    %963 = vmatprep.subr.bf16.mxu0 0
    %964 = vmatpush1.bf16.msra.mxu0 0
    %965 = vmatprep.subr.bf16.mxu0 0
    %966 = vmatpush1.bf16.msra.mxu0 0
    %967 = vmatprep.subr.bf16.mxu0 0
    %968 = vmatpush1.bf16.msra.mxu0 0
    %969 = vmatprep.subr.bf16.mxu0 0
    %970 = vmatpush1.bf16.msra.mxu0 0
    %971 = vmatprep.subr.bf16.mxu0 0
    %972 = vmatpush1.bf16.msra.mxu0 0
    %973 = vmatprep.subr.bf16.mxu0 0
    %974 = vmatpush1.bf16.msra.mxu0 0
    %975 = vmatprep.subr.bf16.mxu0 0
    %976 = vmatpush1.bf16.msra.mxu0 0
    %977 = vmatprep.subr.bf16.mxu0 0
    %978 = vmatpush1.bf16.msra.mxu0 0
    %979 = vmatprep.mubr.bf16.mxu0 0
    %980 = vmatmul.mubr.bf16.gmra.mrb[0].mxu0 %v945
    %v981 = vpop.f32.mrb[0].mxu0
    %v982 = vadd.f32 0.0, %v981
    %v983 = vpop.f32.mrb[0].mxu0
    %v984 = vadd.f32 0.0, %v983
    %v985 = vpop.f32.mrb[0].mxu0
    %v986 = vadd.f32 0.0, %v985
    %v987 = vpop.f32.mrb[0].mxu0
    %v988 = vadd.f32 0.0, %v987
    %989 = vdwg.mxu0
    %990 = vmatprep.subr.bf16.mxu0 %v934
    %991 = vmatpush1.bf16.msra.mxu0 %v933
    %992 = vmatprep.subr.bf16.mxu0 0
    %993 = vmatpush1.bf16.msra.mxu0 0
    %994 = vmatprep.subr.bf16.mxu0 0
    %995 = vmatpush1.bf16.msra.mxu0 0
    %996 = vmatprep.subr.bf16.mxu0 0
    %997 = vmatpush1.bf16.msra.mxu0 0
    %998 = vmatprep.subr.bf16.mxu0 0
    %999 = vmatpush1.bf16.msra.mxu0 0
    %1000 = vmatprep.subr.bf16.mxu0 0
    %1001 = vmatpush1.bf16.msra.mxu0 0
    %1002 = vmatprep.subr.bf16.mxu0 0
    %1003 = vmatpush1.bf16.msra.mxu0 0
    %1004 = vmatprep.subr.bf16.mxu0 0
    %1005 = vmatpush1.bf16.msra.mxu0 0
    %1006 = vmatprep.subr.bf16.mxu0 0
    %1007 = vmatpush1.bf16.msra.mxu0 0
    %1008 = vmatprep.subr.bf16.mxu0 0
    %1009 = vmatpush1.bf16.msra.mxu0 0
    %1010 = vmatprep.subr.bf16.mxu0 0
    %1011 = vmatpush1.bf16.msra.mxu0 0
    %1012 = vmatprep.subr.bf16.mxu0 0
    %1013 = vmatpush1.bf16.msra.mxu0 0
    %1014 = vmatprep.subr.bf16.mxu0 0
    %1015 = vmatpush1.bf16.msra.mxu0 0
    %1016 = vmatprep.subr.bf16.mxu0 0
    %1017 = vmatpush1.bf16.msra.mxu0 0
    %1018 = vmatprep.subr.bf16.mxu0 0
    %1019 = vmatpush1.bf16.msra.mxu0 0
    %1020 = vmatprep.subr.bf16.mxu0 0
    %1021 = vmatpush1.bf16.msra.mxu0 0
    %1022 = vmatprep.mubr.bf16.mxu0 0
    %1023 = vmatmul.mubr.bf16.gmra.mrb[0].mxu0 %v945
    %v1024 = vpop.f32.mrb[0].mxu0
    %v1025 = vadd.f32 0.0, %v1024
    %v1026 = vpop.f32.mrb[0].mxu0
    %v1027 = vadd.f32 0.0, %v1026
    %v1028 = vpop.f32.mrb[0].mxu0
    %v1029 = vadd.f32 0.0, %v1028
    %v1030 = vpop.f32.mrb[0].mxu0
    %v1031 = vadd.f32 0.0, %v1030
    %1032 = vdwg.mxu0
    %1033 = vmatprep.subr.bf16.mxu0 %v936
    %1034 = vmatpush1.bf16.msra.mxu0 %v935
    %1035 = vmatprep.subr.bf16.mxu0 0
    %1036 = vmatpush1.bf16.msra.mxu0 0
    %1037 = vmatprep.subr.bf16.mxu0 0
    %1038 = vmatpush1.bf16.msra.mxu0 0
    %1039 = vmatprep.subr.bf16.mxu0 0
    %1040 = vmatpush1.bf16.msra.mxu0 0
    %1041 = vmatprep.subr.bf16.mxu0 0
    %1042 = vmatpush1.bf16.msra.mxu0 0
    %1043 = vmatprep.subr.bf16.mxu0 0
    %1044 = vmatpush1.bf16.msra.mxu0 0
    %1045 = vmatprep.subr.bf16.mxu0 0
    %1046 = vmatpush1.bf16.msra.mxu0 0
    %1047 = vmatprep.subr.bf16.mxu0 0
    %1048 = vmatpush1.bf16.msra.mxu0 0
    %1049 = vmatprep.subr.bf16.mxu0 0
    %1050 = vmatpush1.bf16.msra.mxu0 0
    %1051 = vmatprep.subr.bf16.mxu0 0
    %1052 = vmatpush1.bf16.msra.mxu0 0
    %1053 = vmatprep.subr.bf16.mxu0 0
    %1054 = vmatpush1.bf16.msra.mxu0 0
    %1055 = vmatprep.subr.bf16.mxu0 0
    %1056 = vmatpush1.bf16.msra.mxu0 0
    %1057 = vmatprep.subr.bf16.mxu0 0
    %1058 = vmatpush1.bf16.msra.mxu0 0
    %1059 = vmatprep.subr.bf16.mxu0 0
    %1060 = vmatpush1.bf16.msra.mxu0 0
    %1061 = vmatprep.subr.bf16.mxu0 0
    %1062 = vmatpush1.bf16.msra.mxu0 0
    %1063 = vmatprep.subr.bf16.mxu0 0
    %1064 = vmatpush1.bf16.msra.mxu0 0
    %1065 = vmatprep.mubr.bf16.mxu0 0
    %1066 = vmatmul.mubr.bf16.gmra.mrb[0].mxu0 %v945
    %v1067 = vpop.f32.mrb[0].mxu0
    %v1068 = vadd.f32 0.0, %v1067
    %v1069 = vpop.f32.mrb[0].mxu0
    %v1070 = vadd.f32 0.0, %v1069
    %v1071 = vpop.f32.mrb[0].mxu0
    %v1072 = vadd.f32 0.0, %v1071
    %v1073 = vpop.f32.mrb[0].mxu0
    %v1074 = vadd.f32 0.0, %v1073
    %1075 = vdwg.mxu0
    %v1076 = vpack.c.bf16 %v986, %v982
    %v1077 = vpack.c.bf16 %v988, %v984
    %v1078 = vpack.c.bf16 %v1029, %v1025
    %v1079 = vpack.c.bf16 %v1031, %v1027
    %v1080 = vpack.c.bf16 %v1072, %v1068
    %v1081 = vpack.c.bf16 %v1074, %v1070
    %1082 = vst [vmem:[#allocation2] sm:$0xff] %v1076
    %1083 = vst [vmem:[#allocation2 + $0x8] sm:$0xff] %v1077
    %1084 = vst [vmem:[#allocation2 + $0x10] sm:$0xff] %v1078
    %1085 = vst [vmem:[#allocation2 + $0x18] sm:$0xff] %v1079
    %1086 = vst [vmem:[#allocation2 + $0x20] sm:$0xff] %v1080
    %1087 = vst [vmem:[#allocation2 + $0x28] sm:$0xff] %v1081
    %v1088 = vld [vmem:[#allocation2] sm:$0xff]
    %v1089 = vld [vmem:[#allocation9] sm:$0xf]
    %v1090 = vld [vmem:[#allocation9 + $0x4] sm:$0xf]
    %v1091 = vld [vmem:[#allocation9 + $0x8] sm:$0xf]
    %v1092 = vld [vmem:[#allocation9 + $0xc] sm:$0xf]
    %v1093 = vld [vmem:[#allocation9 + $0x10] sm:$0xf]
    %v1094 = vld [vmem:[#allocation9 + $0x14] sm:$0xf]
    %v1095 = vld [vmem:[#allocation9 + $0x18] sm:$0xf]
    %v1096 = vld [vmem:[#allocation9 + $0x1c] sm:$0xf]
    %v1097 = vld [vmem:[#allocation9 + $0x20] sm:$0xf]
    %v1098 = vld [vmem:[#allocation9 + $0x24] sm:$0xf]
    %v1099 = vld [vmem:[#allocation9 + $0x28] sm:$0xf]
    %v1100 = vld [vmem:[#allocation9 + $0x2c] sm:$0xf]
    %v1101 = vld [vmem:[#allocation9 + $0x30] sm:$0xf]
    %v1102 = vld [vmem:[#allocation9 + $0x34] sm:$0xf]
    %v1103 = vld [vmem:[#allocation9 + $0x38] sm:$0xf]
    %v1104 = vld [vmem:[#allocation9 + $0x3c] sm:$0xf]
    %v1121 = vunpack.c.l.b16 %v1089
    %v1122 = vunpack.c.l.b16 %v1090
    %v1123 = vunpack.c.l.b16 %v1091
    %v1124 = vunpack.c.l.b16 %v1092
    %v1125 = vunpack.c.l.b16 %v1093
    %v1126 = vunpack.c.l.b16 %v1094
    %v1127 = vunpack.c.l.b16 %v1095
    %v1128 = vunpack.c.l.b16 %v1096
    %v1129 = vunpack.c.l.b16 %v1097
    %v1130 = vunpack.c.l.b16 %v1098
    %v1131 = vunpack.c.l.b16 %v1099
    %v1132 = vunpack.c.l.b16 %v1100
    %v1133 = vunpack.c.l.b16 %v1101
    %v1134 = vunpack.c.l.b16 %v1102
    %v1135 = vunpack.c.l.b16 %v1103
    %v1136 = vunpack.c.l.b16 %v1104
    %v1137 = vpack.c.b16 %v1122, %v1121
    %v1138 = vpack.c.b16 %v1124, %v1123
    %v1139 = vpack.c.b16 %v1126, %v1125
    %v1140 = vpack.c.b16 %v1128, %v1127
    %v1141 = vpack.c.b16 %v1130, %v1129
    %v1142 = vpack.c.b16 %v1132, %v1131
    %v1143 = vpack.c.b16 %v1134, %v1133
    %v1144 = vpack.c.b16 %v1136, %v1135
    %1153 = vmatprep.subr.bf16.mxu0 0
    %1154 = vmatpush1.bf16.msra.mxu0 %v1137
    %1155 = vmatprep.subr.bf16.mxu0 0
    %1156 = vmatpush1.bf16.msra.mxu0 %v1138
    %1157 = vmatprep.subr.bf16.mxu0 0
    %1158 = vmatpush1.bf16.msra.mxu0 %v1139
    %1159 = vmatprep.subr.bf16.mxu0 0
    %1160 = vmatpush1.bf16.msra.mxu0 %v1140
    %1161 = vmatprep.subr.bf16.mxu0 0
    %1162 = vmatpush1.bf16.msra.mxu0 %v1141
    %1163 = vmatprep.subr.bf16.mxu0 0
    %1164 = vmatpush1.bf16.msra.mxu0 %v1142
    %1165 = vmatprep.subr.bf16.mxu0 0
    %1166 = vmatpush1.bf16.msra.mxu0 %v1143
    %1167 = vmatprep.subr.bf16.mxu0 0
    %1168 = vmatpush1.bf16.msra.mxu0 %v1144
    %1169 = vmatprep.subr.bf16.mxu0 0
    %1170 = vmatpush1.bf16.msra.mxu0 0
    %1171 = vmatprep.subr.bf16.mxu0 0
    %1172 = vmatpush1.bf16.msra.mxu0 0
    %1173 = vmatprep.subr.bf16.mxu0 0
    %1174 = vmatpush1.bf16.msra.mxu0 0
    %1175 = vmatprep.subr.bf16.mxu0 0
    %1176 = vmatpush1.bf16.msra.mxu0 0
    %1177 = vmatprep.subr.bf16.mxu0 0
    %1178 = vmatpush1.bf16.msra.mxu0 0
    %1179 = vmatprep.subr.bf16.mxu0 0
    %1180 = vmatpush1.bf16.msra.mxu0 0
    %1181 = vmatprep.subr.bf16.mxu0 0
    %1182 = vmatpush1.bf16.msra.mxu0 0
    %1183 = vmatprep.subr.bf16.mxu0 0
    %1184 = vmatpush1.bf16.msra.mxu0 0
    %1185 = vmatprep.mubr.bf16.mxu0 0
    %1186 = vmatmul.mubr.bf16.gmra.mrb[0].mxu0 %v1088
    %v1187 = vpop.f32.mrb[0].mxu0
    %v1188 = vadd.f32 0.0, %v1187
    %v1189 = vpop.f32.mrb[0].mxu0
    %v1190 = vpop.f32.mrb[0].mxu0
    %v1191 = vadd.f32 0.0, %v1190
    %v1192 = vpop.f32.mrb[0].mxu0
    %1193 = vdwg.mxu0
    %v1194 = vmax.f32 %v1188, 0.0
    %v1195 = vmax.f32 %v1191, 0.0
    %v1196 = vmin.f32 %v1194, 255.0
    %v1197 = vmin.f32 %v1195, 255.0
    %v1198 = vpack.c.bf16 %v1197, %v1196
    %v1200 = vunpack.c.l.b16 %v1198
    %v1201 = vunpack.c.h.b16 %v1198
    %v1202 = vpack.c.b16 %v1200, %v1200
    %v1203 = vpack.c.b16 %v1201, %v1201
    %1206 = vst [vmem:[#allocation12] sm:$0xf] %v1202
    %1207 = vst [vmem:[#allocation12 + $0x4] sm:$0xf] %v1203
    %v1208 = vld [vmem:[#allocation2 + $0x8] sm:$0xff]
    %v1209 = vld [vmem:[#allocation9] sm:$0xf]
    %v1210 = vld [vmem:[#allocation9 + $0x4] sm:$0xf]
    %v1211 = vld [vmem:[#allocation9 + $0x8] sm:$0xf]
    %v1212 = vld [vmem:[#allocation9 + $0xc] sm:$0xf]
    %v1213 = vld [vmem:[#allocation9 + $0x10] sm:$0xf]
    %v1214 = vld [vmem:[#allocation9 + $0x14] sm:$0xf]
    %v1215 = vld [vmem:[#allocation9 + $0x18] sm:$0xf]
    %v1216 = vld [vmem:[#allocation9 + $0x1c] sm:$0xf]
    %v1217 = vld [vmem:[#allocation9 + $0x20] sm:$0xf]
    %v1218 = vld [vmem:[#allocation9 + $0x24] sm:$0xf]
    %v1219 = vld [vmem:[#allocation9 + $0x28] sm:$0xf]
    %v1220 = vld [vmem:[#allocation9 + $0x2c] sm:$0xf]
    %v1221 = vld [vmem:[#allocation9 + $0x30] sm:$0xf]
    %v1222 = vld [vmem:[#allocation9 + $0x34] sm:$0xf]
    %v1223 = vld [vmem:[#allocation9 + $0x38] sm:$0xf]
    %v1224 = vld [vmem:[#allocation9 + $0x3c] sm:$0xf]
    %v1241 = vunpack.c.l.b16 %v1209
    %v1242 = vunpack.c.l.b16 %v1210
    %v1243 = vunpack.c.l.b16 %v1211
    %v1244 = vunpack.c.l.b16 %v1212
    %v1245 = vunpack.c.l.b16 %v1213
    %v1246 = vunpack.c.l.b16 %v1214
    %v1247 = vunpack.c.l.b16 %v1215
    %v1248 = vunpack.c.l.b16 %v1216
    %v1249 = vunpack.c.l.b16 %v1217
    %v1250 = vunpack.c.l.b16 %v1218
    %v1251 = vunpack.c.l.b16 %v1219
    %v1252 = vunpack.c.l.b16 %v1220
    %v1253 = vunpack.c.l.b16 %v1221
    %v1254 = vunpack.c.l.b16 %v1222
    %v1255 = vunpack.c.l.b16 %v1223
    %v1256 = vunpack.c.l.b16 %v1224
    %v1257 = vpack.c.b16 %v1242, %v1241
    %v1258 = vpack.c.b16 %v1244, %v1243
    %v1259 = vpack.c.b16 %v1246, %v1245
    %v1260 = vpack.c.b16 %v1248, %v1247
    %v1261 = vpack.c.b16 %v1250, %v1249
    %v1262 = vpack.c.b16 %v1252, %v1251
    %v1263 = vpack.c.b16 %v1254, %v1253
    %v1264 = vpack.c.b16 %v1256, %v1255
    %1273 = vmatprep.subr.bf16.mxu0 0
    %1274 = vmatpush1.bf16.msra.mxu0 %v1257
    %1275 = vmatprep.subr.bf16.mxu0 0
    %1276 = vmatpush1.bf16.msra.mxu0 %v1258
    %1277 = vmatprep.subr.bf16.mxu0 0
    %1278 = vmatpush1.bf16.msra.mxu0 %v1259
    %1279 = vmatprep.subr.bf16.mxu0 0
    %1280 = vmatpush1.bf16.msra.mxu0 %v1260
    %1281 = vmatprep.subr.bf16.mxu0 0
    %1282 = vmatpush1.bf16.msra.mxu0 %v1261
    %1283 = vmatprep.subr.bf16.mxu0 0
    %1284 = vmatpush1.bf16.msra.mxu0 %v1262
    %1285 = vmatprep.subr.bf16.mxu0 0
    %1286 = vmatpush1.bf16.msra.mxu0 %v1263
    %1287 = vmatprep.subr.bf16.mxu0 0
    %1288 = vmatpush1.bf16.msra.mxu0 %v1264
    %1289 = vmatprep.subr.bf16.mxu0 0
    %1290 = vmatpush1.bf16.msra.mxu0 0
    %1291 = vmatprep.subr.bf16.mxu0 0
    %1292 = vmatpush1.bf16.msra.mxu0 0
    %1293 = vmatprep.subr.bf16.mxu0 0
    %1294 = vmatpush1.bf16.msra.mxu0 0
    %1295 = vmatprep.subr.bf16.mxu0 0
    %1296 = vmatpush1.bf16.msra.mxu0 0
    %1297 = vmatprep.subr.bf16.mxu0 0
    %1298 = vmatpush1.bf16.msra.mxu0 0
    %1299 = vmatprep.subr.bf16.mxu0 0
    %1300 = vmatpush1.bf16.msra.mxu0 0
    %1301 = vmatprep.subr.bf16.mxu0 0
    %1302 = vmatpush1.bf16.msra.mxu0 0
    %1303 = vmatprep.subr.bf16.mxu0 0
    %1304 = vmatpush1.bf16.msra.mxu0 0
    %1305 = vmatprep.mubr.bf16.mxu0 0
    %1306 = vmatmul.mubr.bf16.gmra.mrb[0].mxu0 %v1208
    %v1307 = vpop.f32.mrb[0].mxu0
    %v1308 = vadd.f32 0.0, %v1307
    %v1309 = vpop.f32.mrb[0].mxu0
    %v1310 = vpop.f32.mrb[0].mxu0
    %v1311 = vadd.f32 0.0, %v1310
    %v1312 = vpop.f32.mrb[0].mxu0
    %1313 = vdwg.mxu0
    %v1314 = vmax.f32 %v1308, 0.0
    %v1315 = vmax.f32 %v1311, 0.0
    %v1316 = vmin.f32 %v1314, 255.0
    %v1317 = vmin.f32 %v1315, 255.0
    %v1318 = vpack.c.bf16 %v1317, %v1316
    %v1320 = vunpack.c.l.b16 %v1318
    %v1321 = vunpack.c.h.b16 %v1318
    %v1322 = vpack.c.b16 %v1320, %v1320
    %v1323 = vpack.c.b16 %v1321, %v1321
    %s1326 = scalar_lea.vmem [#allocation12], 8
    %1327 = vst [vmem:[%s1326] sm:$0xf] %v1322
    %1328 = vst [vmem:[%s1326 + $0x4] sm:$0xf] %v1323
    %v1329 = vld [vmem:[#allocation2 + $0x10] sm:$0xff]
    %v1330 = vld [vmem:[#allocation9] sm:$0xf]
    %v1331 = vld [vmem:[#allocation9 + $0x4] sm:$0xf]
    %v1332 = vld [vmem:[#allocation9 + $0x8] sm:$0xf]
    %v1333 = vld [vmem:[#allocation9 + $0xc] sm:$0xf]
    %v1334 = vld [vmem:[#allocation9 + $0x10] sm:$0xf]
    %v1335 = vld [vmem:[#allocation9 + $0x14] sm:$0xf]
    %v1336 = vld [vmem:[#allocation9 + $0x18] sm:$0xf]
    %v1337 = vld [vmem:[#allocation9 + $0x1c] sm:$0xf]
    %v1338 = vld [vmem:[#allocation9 + $0x20] sm:$0xf]
    %v1339 = vld [vmem:[#allocation9 + $0x24] sm:$0xf]
    %v1340 = vld [vmem:[#allocation9 + $0x28] sm:$0xf]
    %v1341 = vld [vmem:[#allocation9 + $0x2c] sm:$0xf]
    %v1342 = vld [vmem:[#allocation9 + $0x30] sm:$0xf]
    %v1343 = vld [vmem:[#allocation9 + $0x34] sm:$0xf]
    %v1344 = vld [vmem:[#allocation9 + $0x38] sm:$0xf]
    %v1345 = vld [vmem:[#allocation9 + $0x3c] sm:$0xf]
    %v1362 = vunpack.c.l.b16 %v1330
    %v1363 = vunpack.c.l.b16 %v1331
    %v1364 = vunpack.c.l.b16 %v1332
    %v1365 = vunpack.c.l.b16 %v1333
    %v1366 = vunpack.c.l.b16 %v1334
    %v1367 = vunpack.c.l.b16 %v1335
    %v1368 = vunpack.c.l.b16 %v1336
    %v1369 = vunpack.c.l.b16 %v1337
    %v1370 = vunpack.c.l.b16 %v1338
    %v1371 = vunpack.c.l.b16 %v1339
    %v1372 = vunpack.c.l.b16 %v1340
    %v1373 = vunpack.c.l.b16 %v1341
    %v1374 = vunpack.c.l.b16 %v1342
    %v1375 = vunpack.c.l.b16 %v1343
    %v1376 = vunpack.c.l.b16 %v1344
    %v1377 = vunpack.c.l.b16 %v1345
    %v1378 = vpack.c.b16 %v1363, %v1362
    %v1379 = vpack.c.b16 %v1365, %v1364
    %v1380 = vpack.c.b16 %v1367, %v1366
    %v1381 = vpack.c.b16 %v1369, %v1368
    %v1382 = vpack.c.b16 %v1371, %v1370
    %v1383 = vpack.c.b16 %v1373, %v1372
    %v1384 = vpack.c.b16 %v1375, %v1374
    %v1385 = vpack.c.b16 %v1377, %v1376
    %1394 = vmatprep.subr.bf16.mxu0 0
    %1395 = vmatpush1.bf16.msra.mxu0 %v1378
    %1396 = vmatprep.subr.bf16.mxu0 0
    %1397 = vmatpush1.bf16.msra.mxu0 %v1379
    %1398 = vmatprep.subr.bf16.mxu0 0
    %1399 = vmatpush1.bf16.msra.mxu0 %v1380
    %1400 = vmatprep.subr.bf16.mxu0 0
    %1401 = vmatpush1.bf16.msra.mxu0 %v1381
    %1402 = vmatprep.subr.bf16.mxu0 0
    %1403 = vmatpush1.bf16.msra.mxu0 %v1382
    %1404 = vmatprep.subr.bf16.mxu0 0
    %1405 = vmatpush1.bf16.msra.mxu0 %v1383
    %1406 = vmatprep.subr.bf16.mxu0 0
    %1407 = vmatpush1.bf16.msra.mxu0 %v1384
    %1408 = vmatprep.subr.bf16.mxu0 0
    %1409 = vmatpush1.bf16.msra.mxu0 %v1385
    %1410 = vmatprep.subr.bf16.mxu0 0
    %1411 = vmatpush1.bf16.msra.mxu0 0
    %1412 = vmatprep.subr.bf16.mxu0 0
    %1413 = vmatpush1.bf16.msra.mxu0 0
    %1414 = vmatprep.subr.bf16.mxu0 0
    %1415 = vmatpush1.bf16.msra.mxu0 0
    %1416 = vmatprep.subr.bf16.mxu0 0
    %1417 = vmatpush1.bf16.msra.mxu0 0
    %1418 = vmatprep.subr.bf16.mxu0 0
    %1419 = vmatpush1.bf16.msra.mxu0 0
    %1420 = vmatprep.subr.bf16.mxu0 0
    %1421 = vmatpush1.bf16.msra.mxu0 0
    %1422 = vmatprep.subr.bf16.mxu0 0
    %1423 = vmatpush1.bf16.msra.mxu0 0
    %1424 = vmatprep.subr.bf16.mxu0 0
    %1425 = vmatpush1.bf16.msra.mxu0 0
    %1426 = vmatprep.mubr.bf16.mxu0 0
    %1427 = vmatmul.mubr.bf16.gmra.mrb[0].mxu0 %v1329
    %v1428 = vpop.f32.mrb[0].mxu0
    %v1429 = vadd.f32 0.0, %v1428
    %v1430 = vpop.f32.mrb[0].mxu0
    %v1431 = vpop.f32.mrb[0].mxu0
    %v1432 = vadd.f32 0.0, %v1431
    %v1433 = vpop.f32.mrb[0].mxu0
    %1434 = vdwg.mxu0
    %v1435 = vmax.f32 %v1429, 0.0
    %v1436 = vmax.f32 %v1432, 0.0
    %v1437 = vmin.f32 %v1435, 255.0
    %v1438 = vmin.f32 %v1436, 255.0
    %v1439 = vpack.c.bf16 %v1438, %v1437
    %v1441 = vunpack.c.l.b16 %v1439
    %v1442 = vunpack.c.h.b16 %v1439
    %v1443 = vpack.c.b16 %v1441, %v1441
    %v1444 = vpack.c.b16 %v1442, %v1442
    %s1447 = scalar_lea.vmem [#allocation12], 16
    %1448 = vst [vmem:[%s1447] sm:$0xf] %v1443
    %1449 = vst [vmem:[%s1447 + $0x4] sm:$0xf] %v1444
    %v1450 = vld [vmem:[#allocation2 + $0x18] sm:$0xff]
    %v1451 = vld [vmem:[#allocation9] sm:$0xf]
    %v1452 = vld [vmem:[#allocation9 + $0x4] sm:$0xf]
    %v1453 = vld [vmem:[#allocation9 + $0x8] sm:$0xf]
    %v1454 = vld [vmem:[#allocation9 + $0xc] sm:$0xf]
    %v1455 = vld [vmem:[#allocation9 + $0x10] sm:$0xf]
    %v1456 = vld [vmem:[#allocation9 + $0x14] sm:$0xf]
    %v1457 = vld [vmem:[#allocation9 + $0x18] sm:$0xf]
    %v1458 = vld [vmem:[#allocation9 + $0x1c] sm:$0xf]
    %v1459 = vld [vmem:[#allocation9 + $0x20] sm:$0xf]
    %v1460 = vld [vmem:[#allocation9 + $0x24] sm:$0xf]
    %v1461 = vld [vmem:[#allocation9 + $0x28] sm:$0xf]
    %v1462 = vld [vmem:[#allocation9 + $0x2c] sm:$0xf]
    %v1463 = vld [vmem:[#allocation9 + $0x30] sm:$0xf]
    %v1464 = vld [vmem:[#allocation9 + $0x34] sm:$0xf]
    %v1465 = vld [vmem:[#allocation9 + $0x38] sm:$0xf]
    %v1466 = vld [vmem:[#allocation9 + $0x3c] sm:$0xf]
    %v1483 = vunpack.c.l.b16 %v1451
    %v1484 = vunpack.c.l.b16 %v1452
    %v1485 = vunpack.c.l.b16 %v1453
    %v1486 = vunpack.c.l.b16 %v1454
    %v1487 = vunpack.c.l.b16 %v1455
    %v1488 = vunpack.c.l.b16 %v1456
    %v1489 = vunpack.c.l.b16 %v1457
    %v1490 = vunpack.c.l.b16 %v1458
    %v1491 = vunpack.c.l.b16 %v1459
    %v1492 = vunpack.c.l.b16 %v1460
    %v1493 = vunpack.c.l.b16 %v1461
    %v1494 = vunpack.c.l.b16 %v1462
    %v1495 = vunpack.c.l.b16 %v1463
    %v1496 = vunpack.c.l.b16 %v1464
    %v1497 = vunpack.c.l.b16 %v1465
    %v1498 = vunpack.c.l.b16 %v1466
    %v1499 = vpack.c.b16 %v1484, %v1483
    %v1500 = vpack.c.b16 %v1486, %v1485
    %v1501 = vpack.c.b16 %v1488, %v1487
    %v1502 = vpack.c.b16 %v1490, %v1489
    %v1503 = vpack.c.b16 %v1492, %v1491
    %v1504 = vpack.c.b16 %v1494, %v1493
    %v1505 = vpack.c.b16 %v1496, %v1495
    %v1506 = vpack.c.b16 %v1498, %v1497
    %1515 = vmatprep.subr.bf16.mxu0 0
    %1516 = vmatpush1.bf16.msra.mxu0 %v1499
    %1517 = vmatprep.subr.bf16.mxu0 0
    %1518 = vmatpush1.bf16.msra.mxu0 %v1500
    %1519 = vmatprep.subr.bf16.mxu0 0
    %1520 = vmatpush1.bf16.msra.mxu0 %v1501
    %1521 = vmatprep.subr.bf16.mxu0 0
    %1522 = vmatpush1.bf16.msra.mxu0 %v1502
    %1523 = vmatprep.subr.bf16.mxu0 0
    %1524 = vmatpush1.bf16.msra.mxu0 %v1503
    %1525 = vmatprep.subr.bf16.mxu0 0
    %1526 = vmatpush1.bf16.msra.mxu0 %v1504
    %1527 = vmatprep.subr.bf16.mxu0 0
    %1528 = vmatpush1.bf16.msra.mxu0 %v1505
    %1529 = vmatprep.subr.bf16.mxu0 0
    %1530 = vmatpush1.bf16.msra.mxu0 %v1506
    %1531 = vmatprep.subr.bf16.mxu0 0
    %1532 = vmatpush1.bf16.msra.mxu0 0
    %1533 = vmatprep.subr.bf16.mxu0 0
    %1534 = vmatpush1.bf16.msra.mxu0 0
    %1535 = vmatprep.subr.bf16.mxu0 0
    %1536 = vmatpush1.bf16.msra.mxu0 0
    %1537 = vmatprep.subr.bf16.mxu0 0
    %1538 = vmatpush1.bf16.msra.mxu0 0
    %1539 = vmatprep.subr.bf16.mxu0 0
    %1540 = vmatpush1.bf16.msra.mxu0 0
    %1541 = vmatprep.subr.bf16.mxu0 0
    %1542 = vmatpush1.bf16.msra.mxu0 0
    %1543 = vmatprep.subr.bf16.mxu0 0
    %1544 = vmatpush1.bf16.msra.mxu0 0
    %1545 = vmatprep.subr.bf16.mxu0 0
    %1546 = vmatpush1.bf16.msra.mxu0 0
    %1547 = vmatprep.mubr.bf16.mxu0 0
    %1548 = vmatmul.mubr.bf16.gmra.mrb[0].mxu0 %v1450
    %v1549 = vpop.f32.mrb[0].mxu0
    %v1550 = vadd.f32 0.0, %v1549
    %v1551 = vpop.f32.mrb[0].mxu0
    %v1552 = vpop.f32.mrb[0].mxu0
    %v1553 = vadd.f32 0.0, %v1552
    %v1554 = vpop.f32.mrb[0].mxu0
    %1555 = vdwg.mxu0
    %v1556 = vmax.f32 %v1550, 0.0
    %v1557 = vmax.f32 %v1553, 0.0
    %v1558 = vmin.f32 %v1556, 255.0
    %v1559 = vmin.f32 %v1557, 255.0
    %v1560 = vpack.c.bf16 %v1559, %v1558
    %v1562 = vunpack.c.l.b16 %v1560
    %v1563 = vunpack.c.h.b16 %v1560
    %v1564 = vpack.c.b16 %v1562, %v1562
    %v1565 = vpack.c.b16 %v1563, %v1563
    %s1568 = scalar_lea.vmem [#allocation12], 24
    %1569 = vst [vmem:[%s1568] sm:$0xf] %v1564
    %1570 = vst [vmem:[%s1568 + $0x4] sm:$0xf] %v1565
    %v1571 = vld [vmem:[#allocation2 + $0x20] sm:$0xff]
    %v1572 = vld [vmem:[#allocation9] sm:$0xf]
    %v1573 = vld [vmem:[#allocation9 + $0x4] sm:$0xf]
    %v1574 = vld [vmem:[#allocation9 + $0x8] sm:$0xf]
    %v1575 = vld [vmem:[#allocation9 + $0xc] sm:$0xf]
    %v1576 = vld [vmem:[#allocation9 + $0x10] sm:$0xf]
    %v1577 = vld [vmem:[#allocation9 + $0x14] sm:$0xf]
    %v1578 = vld [vmem:[#allocation9 + $0x18] sm:$0xf]
    %v1579 = vld [vmem:[#allocation9 + $0x1c] sm:$0xf]
    %v1580 = vld [vmem:[#allocation9 + $0x20] sm:$0xf]
    %v1581 = vld [vmem:[#allocation9 + $0x24] sm:$0xf]
    %v1582 = vld [vmem:[#allocation9 + $0x28] sm:$0xf]
    %v1583 = vld [vmem:[#allocation9 + $0x2c] sm:$0xf]
    %v1584 = vld [vmem:[#allocation9 + $0x30] sm:$0xf]
    %v1585 = vld [vmem:[#allocation9 + $0x34] sm:$0xf]
    %v1586 = vld [vmem:[#allocation9 + $0x38] sm:$0xf]
    %v1587 = vld [vmem:[#allocation9 + $0x3c] sm:$0xf]
    %v1604 = vunpack.c.l.b16 %v1572
    %v1605 = vunpack.c.l.b16 %v1573
    %v1606 = vunpack.c.l.b16 %v1574
    %v1607 = vunpack.c.l.b16 %v1575
    %v1608 = vunpack.c.l.b16 %v1576
    %v1609 = vunpack.c.l.b16 %v1577
    %v1610 = vunpack.c.l.b16 %v1578
    %v1611 = vunpack.c.l.b16 %v1579
    %v1612 = vunpack.c.l.b16 %v1580
    %v1613 = vunpack.c.l.b16 %v1581
    %v1614 = vunpack.c.l.b16 %v1582
    %v1615 = vunpack.c.l.b16 %v1583
    %v1616 = vunpack.c.l.b16 %v1584
    %v1617 = vunpack.c.l.b16 %v1585
    %v1618 = vunpack.c.l.b16 %v1586
    %v1619 = vunpack.c.l.b16 %v1587
    %v1620 = vpack.c.b16 %v1605, %v1604
    %v1621 = vpack.c.b16 %v1607, %v1606
    %v1622 = vpack.c.b16 %v1609, %v1608
    %v1623 = vpack.c.b16 %v1611, %v1610
    %v1624 = vpack.c.b16 %v1613, %v1612
    %v1625 = vpack.c.b16 %v1615, %v1614
    %v1626 = vpack.c.b16 %v1617, %v1616
    %v1627 = vpack.c.b16 %v1619, %v1618
    %1636 = vmatprep.subr.bf16.mxu0 0
    %1637 = vmatpush1.bf16.msra.mxu0 %v1620
    %1638 = vmatprep.subr.bf16.mxu0 0
    %1639 = vmatpush1.bf16.msra.mxu0 %v1621
    %1640 = vmatprep.subr.bf16.mxu0 0
    %1641 = vmatpush1.bf16.msra.mxu0 %v1622
    %1642 = vmatprep.subr.bf16.mxu0 0
    %1643 = vmatpush1.bf16.msra.mxu0 %v1623
    %1644 = vmatprep.subr.bf16.mxu0 0
    %1645 = vmatpush1.bf16.msra.mxu0 %v1624
    %1646 = vmatprep.subr.bf16.mxu0 0
    %1647 = vmatpush1.bf16.msra.mxu0 %v1625
    %1648 = vmatprep.subr.bf16.mxu0 0
    %1649 = vmatpush1.bf16.msra.mxu0 %v1626
    %1650 = vmatprep.subr.bf16.mxu0 0
    %1651 = vmatpush1.bf16.msra.mxu0 %v1627
    %1652 = vmatprep.subr.bf16.mxu0 0
    %1653 = vmatpush1.bf16.msra.mxu0 0
    %1654 = vmatprep.subr.bf16.mxu0 0
    %1655 = vmatpush1.bf16.msra.mxu0 0
    %1656 = vmatprep.subr.bf16.mxu0 0
    %1657 = vmatpush1.bf16.msra.mxu0 0
    %1658 = vmatprep.subr.bf16.mxu0 0
    %1659 = vmatpush1.bf16.msra.mxu0 0
    %1660 = vmatprep.subr.bf16.mxu0 0
    %1661 = vmatpush1.bf16.msra.mxu0 0
    %1662 = vmatprep.subr.bf16.mxu0 0
    %1663 = vmatpush1.bf16.msra.mxu0 0
    %1664 = vmatprep.subr.bf16.mxu0 0
    %1665 = vmatpush1.bf16.msra.mxu0 0
    %1666 = vmatprep.subr.bf16.mxu0 0
    %1667 = vmatpush1.bf16.msra.mxu0 0
    %1668 = vmatprep.mubr.bf16.mxu0 0
    %1669 = vmatmul.mubr.bf16.gmra.mrb[0].mxu0 %v1571
    %v1670 = vpop.f32.mrb[0].mxu0
    %v1671 = vadd.f32 0.0, %v1670
    %v1672 = vpop.f32.mrb[0].mxu0
    %v1673 = vpop.f32.mrb[0].mxu0
    %v1674 = vadd.f32 0.0, %v1673
    %v1675 = vpop.f32.mrb[0].mxu0
    %1676 = vdwg.mxu0
    %v1677 = vmax.f32 %v1671, 0.0
    %v1678 = vmax.f32 %v1674, 0.0
    %v1679 = vmin.f32 %v1677, 255.0
    %v1680 = vmin.f32 %v1678, 255.0
    %v1681 = vpack.c.bf16 %v1680, %v1679
    %v1683 = vunpack.c.l.b16 %v1681
    %v1684 = vunpack.c.h.b16 %v1681
    %v1685 = vpack.c.b16 %v1683, %v1683
    %v1686 = vpack.c.b16 %v1684, %v1684
    %s1689 = scalar_lea.vmem [#allocation12], 32
    %1690 = vst [vmem:[%s1689] sm:$0xf] %v1685
    %1691 = vst [vmem:[%s1689 + $0x4] sm:$0xf] %v1686
    %v1692 = vld [vmem:[#allocation2 + $0x28] sm:$0xff]
    %v1693 = vld [vmem:[#allocation9] sm:$0xf]
    %v1694 = vld [vmem:[#allocation9 + $0x4] sm:$0xf]
    %v1695 = vld [vmem:[#allocation9 + $0x8] sm:$0xf]
    %v1696 = vld [vmem:[#allocation9 + $0xc] sm:$0xf]
    %v1697 = vld [vmem:[#allocation9 + $0x10] sm:$0xf]
    %v1698 = vld [vmem:[#allocation9 + $0x14] sm:$0xf]
    %v1699 = vld [vmem:[#allocation9 + $0x18] sm:$0xf]
    %v1700 = vld [vmem:[#allocation9 + $0x1c] sm:$0xf]
    %v1701 = vld [vmem:[#allocation9 + $0x20] sm:$0xf]
    %v1702 = vld [vmem:[#allocation9 + $0x24] sm:$0xf]
    %v1703 = vld [vmem:[#allocation9 + $0x28] sm:$0xf]
    %v1704 = vld [vmem:[#allocation9 + $0x2c] sm:$0xf]
    %v1705 = vld [vmem:[#allocation9 + $0x30] sm:$0xf]
    %v1706 = vld [vmem:[#allocation9 + $0x34] sm:$0xf]
    %v1707 = vld [vmem:[#allocation9 + $0x38] sm:$0xf]
    %v1708 = vld [vmem:[#allocation9 + $0x3c] sm:$0xf]
    %v1725 = vunpack.c.l.b16 %v1693
    %v1726 = vunpack.c.l.b16 %v1694
    %v1727 = vunpack.c.l.b16 %v1695
    %v1728 = vunpack.c.l.b16 %v1696
    %v1729 = vunpack.c.l.b16 %v1697
    %v1730 = vunpack.c.l.b16 %v1698
    %v1731 = vunpack.c.l.b16 %v1699
    %v1732 = vunpack.c.l.b16 %v1700
    %v1733 = vunpack.c.l.b16 %v1701
    %v1734 = vunpack.c.l.b16 %v1702
    %v1735 = vunpack.c.l.b16 %v1703
    %v1736 = vunpack.c.l.b16 %v1704
    %v1737 = vunpack.c.l.b16 %v1705
    %v1738 = vunpack.c.l.b16 %v1706
    %v1739 = vunpack.c.l.b16 %v1707
    %v1740 = vunpack.c.l.b16 %v1708
    %v1741 = vpack.c.b16 %v1726, %v1725
    %v1742 = vpack.c.b16 %v1728, %v1727
    %v1743 = vpack.c.b16 %v1730, %v1729
    %v1744 = vpack.c.b16 %v1732, %v1731
    %v1745 = vpack.c.b16 %v1734, %v1733
    %v1746 = vpack.c.b16 %v1736, %v1735
    %v1747 = vpack.c.b16 %v1738, %v1737
    %v1748 = vpack.c.b16 %v1740, %v1739
    %1757 = vmatprep.subr.bf16.mxu0 0
    %1758 = vmatpush1.bf16.msra.mxu0 %v1741
    %1759 = vmatprep.subr.bf16.mxu0 0
    %1760 = vmatpush1.bf16.msra.mxu0 %v1742
    %1761 = vmatprep.subr.bf16.mxu0 0
    %1762 = vmatpush1.bf16.msra.mxu0 %v1743
    %1763 = vmatprep.subr.bf16.mxu0 0
    %1764 = vmatpush1.bf16.msra.mxu0 %v1744
    %1765 = vmatprep.subr.bf16.mxu0 0
    %1766 = vmatpush1.bf16.msra.mxu0 %v1745
    %1767 = vmatprep.subr.bf16.mxu0 0
    %1768 = vmatpush1.bf16.msra.mxu0 %v1746
    %1769 = vmatprep.subr.bf16.mxu0 0
    %1770 = vmatpush1.bf16.msra.mxu0 %v1747
    %1771 = vmatprep.subr.bf16.mxu0 0
    %1772 = vmatpush1.bf16.msra.mxu0 %v1748
    %1773 = vmatprep.subr.bf16.mxu0 0
    %1774 = vmatpush1.bf16.msra.mxu0 0
    %1775 = vmatprep.subr.bf16.mxu0 0
    %1776 = vmatpush1.bf16.msra.mxu0 0
    %1777 = vmatprep.subr.bf16.mxu0 0
    %1778 = vmatpush1.bf16.msra.mxu0 0
    %1779 = vmatprep.subr.bf16.mxu0 0
    %1780 = vmatpush1.bf16.msra.mxu0 0
    %1781 = vmatprep.subr.bf16.mxu0 0
    %1782 = vmatpush1.bf16.msra.mxu0 0
    %1783 = vmatprep.subr.bf16.mxu0 0
    %1784 = vmatpush1.bf16.msra.mxu0 0
    %1785 = vmatprep.subr.bf16.mxu0 0
    %1786 = vmatpush1.bf16.msra.mxu0 0
    %1787 = vmatprep.subr.bf16.mxu0 0
    %1788 = vmatpush1.bf16.msra.mxu0 0
    %1789 = vmatprep.mubr.bf16.mxu0 0
    %1790 = vmatmul.mubr.bf16.gmra.mrb[0].mxu0 %v1692
    %v1791 = vpop.f32.mrb[0].mxu0
    %v1792 = vadd.f32 0.0, %v1791
    %v1793 = vpop.f32.mrb[0].mxu0
    %v1794 = vpop.f32.mrb[0].mxu0
    %v1795 = vadd.f32 0.0, %v1794
    %v1796 = vpop.f32.mrb[0].mxu0
    %1797 = vdwg.mxu0
    %v1798 = vmax.f32 %v1792, 0.0
    %v1799 = vmax.f32 %v1795, 0.0
    %v1800 = vmin.f32 %v1798, 255.0
    %v1801 = vmin.f32 %v1799, 255.0
    %v1802 = vpack.c.bf16 %v1801, %v1800
    %v1804 = vunpack.c.l.b16 %v1802
    %v1805 = vunpack.c.h.b16 %v1802
    %v1806 = vpack.c.b16 %v1804, %v1804
    %v1807 = vpack.c.b16 %v1805, %v1805
    %s1810 = scalar_lea.vmem [#allocation12], 40
    %1811 = vst [vmem:[%s1810] sm:$0xf] %v1806
    %1812 = vst [vmem:[%s1810 + $0x4] sm:$0xf] %v1807
    // Predicated region
    $region42: #{tpu_custom_call.1} parent=1 // pred_check
      _
    $region43: #{tpu_custom_call.1} parent=1 // pred_check_branch
      %1814 = sbr.rel (0) target = $region45
    $region44: #{tpu_custom_call.1} parent=1 // pred_region
      %s1816 = ssub.s32 768, 768
      %1817 = vsyncadd [#allocation5], %s1816
      %s1818 = sshll.u32 [#allocation12], 4
      %s1819 = int_to_ptr.vmem [resolvable:$true] %s1818
      %1824 = dma.vmem_to_hbm [thread:$0]  %s1819, 768, %s5, [#allocation5], 64, 64, 4
    $region45: #{tpu_custom_call.1} parent=1 // pred_fallthru
      _
    // Predicated region
    $region46: #{tpu_custom_call.1} parent=1 // pred_check
      _
    $region47: #{tpu_custom_call.1} parent=1 // pred_check_branch
      %1826 = sbr.rel (0) target = $region49
    $region48: #{tpu_custom_call.1} parent=1 // pred_region
      %1827 = dma.done [#allocation5], 768
    $region49: #{tpu_custom_call.1} parent=1 // pred_fallthru
      _
    %1828 = vsyncpa [#allocation4], 1
    %1829 = vsyncpa [#allocation7], 1
    %1830 = vsyncpa [#allocation10], 1
    %1831 = vsyncpa [#allocation5], 1

</llo_original>
